<compile_context>
chip_gen: v5e
topology: v5e:2x2
jax: 0.10.0
libtpu: 0.0.40
codegen_flags: <defaults>
</compile_context>

<pallas_src>
import jax
import jax.numpy as jnp
from jax.experimental import pallas as pl
from jax.experimental.pallas import tpu as pltpu


# ---------------------------------------------------------------------------
# Fused kernel: input projection + GRU recurrence + FC, time axis blocked.
# ---------------------------------------------------------------------------
def gru_fused_kernel(x_ref, wih_ref, bih_ref, whh_ref, bhh_ref, wfc_ref, bfc_ref,
                     out_ref, hidden_ref, h_scratch):
    # x_ref      : (Tt, B, I)  time-major input block
    # wih_ref    : (3, I, H)   gate order [r, z, n], pre-transposed for x @ W
    # whh_ref    : (3, H, H)   pre-transposed for h @ W
    # bih_ref    : (3, 1, H)
    # bhh_ref    : (3, 1, H)
    # wfc_ref    : (H, O)      pre-transposed FC weight
    # bfc_ref    : (1, O)
    # out_ref    : (Tt, B, O)  FC(gru_out) for this time block
    # hidden_ref : (B, H)      final hidden state (written once, last grid step)
    # h_scratch  : (B, H)      recurrent hidden state, persists across grid steps
    tb = pl.program_id(0)

    @pl.when(tb == 0)
    def _init():
        h_scratch[...] = jnp.zeros_like(h_scratch)

    # Hoist weight / bias reads out of the unrolled step loop (JAX does not CSE
    # these per-iteration).
    wir, wiz, win = wih_ref[0], wih_ref[1], wih_ref[2]
    whr, whz, whn = whh_ref[0], whh_ref[1], whh_ref[2]
    b_r = bih_ref[0] + bhh_ref[0]        # r: sigmoid(x@Wir + h@Whr + (b_ir+b_hr))
    b_z = bih_ref[1] + bhh_ref[1]        # z: sigmoid(x@Wiz + h@Whz + (b_iz+b_hz))
    b_in = bih_ref[2]                    # n: tanh(x@Win + b_in + r*(h@Whn + b_hn))
    b_hn = bhh_ref[2]
    wfc = wfc_ref[...]
    bfc = bfc_ref[...]

    tt = out_ref.shape[0]

    def step(i, h):
        x_t = x_ref[i]                                    # (B, I)
        # Only the h-dependent matmuls sit on the serial dependency chain; the
        # x-dependent and FC matmuls overlap freely (MXU has plenty of slack).
        gh_r = jnp.dot(h, whr, preferred_element_type=jnp.float32)
        gh_z = jnp.dot(h, whz, preferred_element_type=jnp.float32)
        gh_n = jnp.dot(h, whn, preferred_element_type=jnp.float32) + b_hn
        gx_r = jnp.dot(x_t, wir, preferred_element_type=jnp.float32)
        gx_z = jnp.dot(x_t, wiz, preferred_element_type=jnp.float32)
        gx_n = jnp.dot(x_t, win, preferred_element_type=jnp.float32) + b_in
        r = jax.nn.sigmoid(gx_r + gh_r + b_r)
        z = jax.nn.sigmoid(gx_z + gh_z + b_z)
        n = jnp.tanh(gx_n + r * gh_n)                     # PyTorch: b_hn inside r*(...)
        h_new = (1.0 - z) * n + z * h
        out_ref[i] = (jnp.dot(h_new, wfc, preferred_element_type=jnp.float32) + bfc)
        return h_new

    h_final = jax.lax.fori_loop(0, tt, step, h_scratch[...], unroll=True)
    h_scratch[...] = h_final

    @pl.when(tb == pl.num_programs(0) - 1)
    def _final():
        hidden_ref[...] = h_final


# ---------------------------------------------------------------------------
# Wrapper
# ---------------------------------------------------------------------------
def _pick_time_block(total, cap):
    """Largest divisor of `total` <= cap (time is the leading / grid dim)."""
    for cand in range(min(total, cap), 0, -1):
        if total % cand == 0:
            return cand
    return total


def gru_encoder_forward(x_btI, params, *, time_block=16):
    """x_btI: (B, T, I) batch_first input (like PyTorch). Returns (output, hidden)."""
    B, T, I = x_btI.shape
    wih_s = params["wih_s"]     # (3, I, H)  gate order [r, z, n]
    whh_s = params["whh_s"]     # (3, H, H)
    bih_s = params["bih_s"]     # (3, 1, H)
    bhh_s = params["bhh_s"]     # (3, 1, H)
    wfc_t = params["wfc_t"]     # (H, O)
    bfc = params["bfc"]         # (1, O)
    H = whh_s.shape[-1]
    O = wfc_t.shape[-1]

    tt = _pick_time_block(T, time_block)

    # Layout transform left to XLA (tiny relative to the kernel at these shapes).
    x_tbi = jnp.transpose(x_btI, (1, 0, 2))         # (T, B, I) time-major

    out_tbo, hidden_bh = pl.pallas_call(
        gru_fused_kernel,
        out_shape=(
            jax.ShapeDtypeStruct((T, B, O), jnp.float32),
            jax.ShapeDtypeStruct((B, H), jnp.float32),
        ),
        grid_spec=pltpu.PrefetchScalarGridSpec(
            num_scalar_prefetch=0,
            grid=(T // tt,),
            in_specs=[
                pl.BlockSpec((tt, B, I), lambda t: (t, 0, 0)),
                pl.BlockSpec(wih_s.shape, lambda t: (0, 0, 0)),
                pl.BlockSpec(bih_s.shape, lambda t: (0, 0, 0)),
                pl.BlockSpec(whh_s.shape, lambda t: (0, 0, 0)),
                pl.BlockSpec(bhh_s.shape, lambda t: (0, 0, 0)),
                pl.BlockSpec(wfc_t.shape, lambda t: (0, 0)),
                pl.BlockSpec(bfc.shape, lambda t: (0, 0)),
            ],
            out_specs=[
                pl.BlockSpec((tt, B, O), lambda t: (t, 0, 0)),   # per-block output
                pl.BlockSpec((B, H), lambda t: (0, 0)),          # final hidden (once)
            ],
            scratch_shapes=[pltpu.VMEM((B, H), jnp.float32)],
        ),
        compiler_params=pltpu.CompilerParams(
            dimension_semantics=("arbitrary",)),                 # time is sequential
    )(x_tbi, wih_s, bih_s, whh_s, bhh_s, wfc_t, bfc)

    output = jnp.transpose(out_tbo, (1, 0, 2))                   # (B, T, O) batch_first
    hidden = hidden_bh[None, :, :]                               # (num_layers=1, B, H)
    return output, hidden


# ---------------------------------------------------------------------------
# Params (PyTorch-style init), gate-split and pre-transposed for the kernel
# ---------------------------------------------------------------------------
def init_params(key, input_size, hidden_size, output_size):
    kih, khh, kbi, kbh, kfw, kfb = jax.random.split(key, 6)
    kH = 1.0 / jnp.sqrt(hidden_size)   # GRU: U(-1/sqrt(H), 1/sqrt(H))
    kL = 1.0 / jnp.sqrt(hidden_size)   # Linear(in_features=H)
    H = hidden_size
    wih = jax.random.uniform(kih, (3 * H, input_size), jnp.float32, -kH, kH)
    whh = jax.random.uniform(khh, (3 * H, H), jnp.float32, -kH, kH)
    bih = jax.random.uniform(kbi, (3 * H,), jnp.float32, -kH, kH)
    bhh = jax.random.uniform(kbh, (3 * H,), jnp.float32, -kH, kH)
    wfc = jax.random.uniform(kfw, (output_size, H), jnp.float32, -kL, kL)
    bfc = jax.random.uniform(kfb, (output_size,), jnp.float32, -kL, kL)
    # Split per gate [r, z, n] and pre-transpose so kernels do (B,K)@(K,N).
    wih_s = jnp.stack([wih[g * H:(g + 1) * H].T for g in range(3)])        # (3, I, H)
    whh_s = jnp.stack([whh[g * H:(g + 1) * H].T for g in range(3)])        # (3, H, H)
    bih_s = jnp.stack([bih[g * H:(g + 1) * H][None, :] for g in range(3)]) # (3, 1, H)
    bhh_s = jnp.stack([bhh[g * H:(g + 1) * H][None, :] for g in range(3)]) # (3, 1, H)
    return {"wih_s": wih_s, "whh_s": whh_s, "bih_s": bih_s, "bhh_s": bhh_s,
            "wfc_t": wfc.T, "bfc": bfc[None, :]}


# ---------------------------------------------------------------------------
# Pure-JAX reference (same math as PyTorch nn.GRU + nn.Linear)
# ---------------------------------------------------------------------------
def gru_encoder_reference(x_btI, params):
    B, T, I = x_btI.shape
    wih_s, whh_s = params["wih_s"], params["whh_s"]
    bih_s, bhh_s = params["bih_s"], params["bhh_s"]
    H = whh_s.shape[-1]

    def step(h, x_t):
        gx_r = x_t @ wih_s[0] + bih_s[0]
        gx_z = x_t @ wih_s[1] + bih_s[1]
        gx_n = x_t @ wih_s[2] + bih_s[2]
        gh_r = h @ whh_s[0] + bhh_s[0]
        gh_z = h @ whh_s[1] + bhh_s[1]
        gh_n = h @ whh_s[2] + bhh_s[2]
        r = jax.nn.sigmoid(gx_r + gh_r)
        z = jax.nn.sigmoid(gx_z + gh_z)
        n = jnp.tanh(gx_n + r * gh_n)
        h_new = (1.0 - z) * n + z * h
        return h_new, h_new

    h0 = jnp.zeros((B, H), jnp.float32)
    x_tbi = jnp.transpose(x_btI, (1, 0, 2))
    h_last, gru_tbh = jax.lax.scan(step, h0, x_tbi)
    out = jnp.einsum("tbh,ho->tbo", gru_tbh, params["wfc_t"]) + params["bfc"]
    return jnp.transpose(out, (1, 0, 2)), h_last[None, :, :]


if __name__ == "__main__":
    B, T, I, H, O = 2, 8, 8, 32, 16
    key = jax.random.PRNGKey(0)
    kx, kp = jax.random.split(key)
    x = jax.random.normal(kx, (B, T, I), jnp.float32)
    params = init_params(kp, I, H, O)

    forward = jax.jit(gru_encoder_forward, static_argnames=("time_block",))
    output, hidden = forward(x, params)
    jax.block_until_ready((output, hidden))

    assert output.shape == (B, T, O)
    assert hidden.shape == (1, B, H)

    ref_out, ref_hid = gru_encoder_reference(x, params)
    assert jnp.allclose(output, ref_out, rtol=1e-4, atol=1e-4)
    assert jnp.allclose(hidden, ref_hid, rtol=1e-4, atol=1e-4)
    print("KERNEL_OK")
</pallas_src>

<mosaic_0001>
module attributes {stable_mosaic.version = 11 : i64} {
  func.func @gru_fused_kernel(%arg0: i32, %arg1: memref<8x2x8xf32, #tpu.memory_space<vmem>>, %arg2: memref<3x8x32xf32, #tpu.memory_space<vmem>>, %arg3: memref<3x1x32xf32, #tpu.memory_space<vmem>>, %arg4: memref<3x32x32xf32, #tpu.memory_space<vmem>>, %arg5: memref<3x1x32xf32, #tpu.memory_space<vmem>>, %arg6: memref<32x16xf32, #tpu.memory_space<vmem>>, %arg7: memref<1x16xf32, #tpu.memory_space<vmem>>, %arg8: memref<8x2x16xf32, #tpu.memory_space<vmem>>, %arg9: memref<2x32xf32, #tpu.memory_space<vmem>>, %arg10: memref<2x32xf32, #tpu.memory_space<vmem>>) attributes {dimension_semantics = [#tpu.dimension_semantics<arbitrary>], iteration_bounds = array<i64: 1>, scalar_prefetch = 0 : i64, scratch_operands = 1 : i64, tpu.core_type = #tpu.core_type<tc>, window_params = [{transform_indices = @transform_0, window_bounds = array<i64: 8, 2, 8>}, {pipeline_mode = #tpu.pipeline_mode<synchronous>, transform_indices = @transform_1, window_bounds = array<i64: 3, 8, 32>}, {pipeline_mode = #tpu.pipeline_mode<synchronous>, transform_indices = @transform_2, window_bounds = array<i64: 3, 1, 32>}, {pipeline_mode = #tpu.pipeline_mode<synchronous>, transform_indices = @transform_3, window_bounds = array<i64: 3, 32, 32>}, {pipeline_mode = #tpu.pipeline_mode<synchronous>, transform_indices = @transform_4, window_bounds = array<i64: 3, 1, 32>}, {pipeline_mode = #tpu.pipeline_mode<synchronous>, transform_indices = @transform_5, window_bounds = array<i64: 32, 16>}, {pipeline_mode = #tpu.pipeline_mode<synchronous>, transform_indices = @transform_6, window_bounds = array<i64: 1, 16>}, {transform_indices = @transform_7, window_bounds = array<i64: 8, 2, 16>}, {pipeline_mode = #tpu.pipeline_mode<synchronous>, transform_indices = @transform_8, window_bounds = array<i64: 2, 32>}]} {
    %c0_i32 = arith.constant 0 : i32
    %0 = arith.cmpi eq, %arg0, %c0_i32 : i32
    %1 = arith.extui %0 : i1 to i32
    %c0_i32_0 = arith.constant 0 : i32
    %2 = arith.cmpi ne, %1, %c0_i32_0 : i32
    scf.if %2 {
      %cst_156 = arith.constant 0.000000e+00 : f32
      %388 = vector.broadcast %cst_156 : f32 to vector<2x32xf32>
      %c0_157 = arith.constant 0 : index
      %c0_158 = arith.constant 0 : index
      %389 = vector.load %arg10[%c0_157, %c0_158] : memref<2x32xf32, #tpu.memory_space<vmem>>, vector<2x32xf32>
      tpu.vector_store %arg10[%c0_157, %c0_158], %388 {strides = array<i32>} : memref<2x32xf32, #tpu.memory_space<vmem>>, vector<2x32xf32>,
    } else {
    }
    %c0 = arith.constant 0 : index
    %c0_1 = arith.constant 0 : index
    %c0_2 = arith.constant 0 : index
    %3 = vector.load %arg2[%c0, %c0_1, %c0_2] : memref<3x8x32xf32, #tpu.memory_space<vmem>>, vector<1x8x32xf32>
    %4 = vector.shape_cast %3 : vector<1x8x32xf32> to vector<8x32xf32>
    %c1 = arith.constant 1 : index
    %c0_3 = arith.constant 0 : index
    %c0_4 = arith.constant 0 : index
    %5 = vector.load %arg2[%c1, %c0_3, %c0_4] : memref<3x8x32xf32, #tpu.memory_space<vmem>>, vector<1x8x32xf32>
    %6 = vector.shape_cast %5 : vector<1x8x32xf32> to vector<8x32xf32>
    %c2 = arith.constant 2 : index
    %c0_5 = arith.constant 0 : index
    %c0_6 = arith.constant 0 : index
    %7 = vector.load %arg2[%c2, %c0_5, %c0_6] : memref<3x8x32xf32, #tpu.memory_space<vmem>>, vector<1x8x32xf32>
    %8 = vector.shape_cast %7 : vector<1x8x32xf32> to vector<8x32xf32>
    %c0_7 = arith.constant 0 : index
    %c0_8 = arith.constant 0 : index
    %c0_9 = arith.constant 0 : index
    %9 = vector.load %arg4[%c0_7, %c0_8, %c0_9] : memref<3x32x32xf32, #tpu.memory_space<vmem>>, vector<1x32x32xf32>
    %10 = vector.shape_cast %9 : vector<1x32x32xf32> to vector<32x32xf32>
    %c1_10 = arith.constant 1 : index
    %c0_11 = arith.constant 0 : index
    %c0_12 = arith.constant 0 : index
    %11 = vector.load %arg4[%c1_10, %c0_11, %c0_12] : memref<3x32x32xf32, #tpu.memory_space<vmem>>, vector<1x32x32xf32>
    %12 = vector.shape_cast %11 : vector<1x32x32xf32> to vector<32x32xf32>
    %c2_13 = arith.constant 2 : index
    %c0_14 = arith.constant 0 : index
    %c0_15 = arith.constant 0 : index
    %13 = vector.load %arg4[%c2_13, %c0_14, %c0_15] : memref<3x32x32xf32, #tpu.memory_space<vmem>>, vector<1x32x32xf32>
    %14 = vector.shape_cast %13 : vector<1x32x32xf32> to vector<32x32xf32>
    %c0_16 = arith.constant 0 : index
    %c0_17 = arith.constant 0 : index
    %c0_18 = arith.constant 0 : index
    %15 = vector.load %arg3[%c0_16, %c0_17, %c0_18] : memref<3x1x32xf32, #tpu.memory_space<vmem>>, vector<1x1x32xf32>
    %16 = vector.shape_cast %15 : vector<1x1x32xf32> to vector<1x32xf32>
    %c0_19 = arith.constant 0 : index
    %c0_20 = arith.constant 0 : index
    %c0_21 = arith.constant 0 : index
    %17 = vector.load %arg5[%c0_19, %c0_20, %c0_21] : memref<3x1x32xf32, #tpu.memory_space<vmem>>, vector<1x1x32xf32>
    %18 = vector.shape_cast %17 : vector<1x1x32xf32> to vector<1x32xf32>
    %19 = arith.addf %16, %18 : vector<1x32xf32>
    %c1_22 = arith.constant 1 : index
    %c0_23 = arith.constant 0 : index
    %c0_24 = arith.constant 0 : index
    %20 = vector.load %arg3[%c1_22, %c0_23, %c0_24] : memref<3x1x32xf32, #tpu.memory_space<vmem>>, vector<1x1x32xf32>
    %21 = vector.shape_cast %20 : vector<1x1x32xf32> to vector<1x32xf32>
    %c1_25 = arith.constant 1 : index
    %c0_26 = arith.constant 0 : index
    %c0_27 = arith.constant 0 : index
    %22 = vector.load %arg5[%c1_25, %c0_26, %c0_27] : memref<3x1x32xf32, #tpu.memory_space<vmem>>, vector<1x1x32xf32>
    %23 = vector.shape_cast %22 : vector<1x1x32xf32> to vector<1x32xf32>
    %24 = arith.addf %21, %23 : vector<1x32xf32>
    %c2_28 = arith.constant 2 : index
    %c0_29 = arith.constant 0 : index
    %c0_30 = arith.constant 0 : index
    %25 = vector.load %arg3[%c2_28, %c0_29, %c0_30] : memref<3x1x32xf32, #tpu.memory_space<vmem>>, vector<1x1x32xf32>
    %26 = vector.shape_cast %25 : vector<1x1x32xf32> to vector<1x32xf32>
    %c2_31 = arith.constant 2 : index
    %c0_32 = arith.constant 0 : index
    %c0_33 = arith.constant 0 : index
    %27 = vector.load %arg5[%c2_31, %c0_32, %c0_33] : memref<3x1x32xf32, #tpu.memory_space<vmem>>, vector<1x1x32xf32>
    %28 = vector.shape_cast %27 : vector<1x1x32xf32> to vector<1x32xf32>
    %c0_34 = arith.constant 0 : index
    %c0_35 = arith.constant 0 : index
    %29 = vector.load %arg6[%c0_34, %c0_35] : memref<32x16xf32, #tpu.memory_space<vmem>>, vector<32x16xf32>
    %c0_36 = arith.constant 0 : index
    %c0_37 = arith.constant 0 : index
    %30 = vector.load %arg7[%c0_36, %c0_37] : memref<1x16xf32, #tpu.memory_space<vmem>>, vector<1x16xf32>
    %c0_38 = arith.constant 0 : index
    %c0_39 = arith.constant 0 : index
    %31 = vector.load %arg10[%c0_38, %c0_39] : memref<2x32xf32, #tpu.memory_space<vmem>>, vector<2x32xf32>
    %c0_i32_40 = arith.constant 0 : i32
    %32 = arith.index_cast %c0_i32_40 : i32 to index
    %c0_41 = arith.constant 0 : index
    %c0_42 = arith.constant 0 : index
    %33 = vector.load %arg1[%32, %c0_41, %c0_42] : memref<8x2x8xf32, #tpu.memory_space<vmem>>, vector<1x2x8xf32>
    %34 = vector.shape_cast %33 : vector<1x2x8xf32> to vector<2x8xf32>
    %cst = arith.constant dense<0.000000e+00> : vector<2x32xf32>
    %35 = tpu.matmul %31, %10, %cst {dimension_numbers = #tpu.dot_dimension_numbers<[1], [0], [0], [1], [0, 0, 1, 1], [], []>} : vector<2x32xf32>, vector<32x32xf32>, vector<2x32xf32> -> vector<2x32xf32>
    %cst_43 = arith.constant dense<0.000000e+00> : vector<2x32xf32>
    %36 = tpu.matmul %31, %12, %cst_43 {dimension_numbers = #tpu.dot_dimension_numbers<[1], [0], [0], [1], [0, 0, 1, 1], [], []>} : vector<2x32xf32>, vector<32x32xf32>, vector<2x32xf32> -> vector<2x32xf32>
    %cst_44 = arith.constant dense<0.000000e+00> : vector<2x32xf32>
    %37 = tpu.matmul %31, %14, %cst_44 {dimension_numbers = #tpu.dot_dimension_numbers<[1], [0], [0], [1], [0, 0, 1, 1], [], []>} : vector<2x32xf32>, vector<32x32xf32>, vector<2x32xf32> -> vector<2x32xf32>
    %38 = vector.broadcast %28 : vector<1x32xf32> to vector<2x32xf32>
    %39 = arith.addf %37, %38 : vector<2x32xf32>
    %cst_45 = arith.constant dense<0.000000e+00> : vector<2x32xf32>
    %40 = tpu.matmul %34, %4, %cst_45 {dimension_numbers = #tpu.dot_dimension_numbers<[1], [0], [0], [1], [0, 0, 1, 1], [], []>} : vector<2x8xf32>, vector<8x32xf32>, vector<2x32xf32> -> vector<2x32xf32>
    %cst_46 = arith.constant dense<0.000000e+00> : vector<2x32xf32>
    %41 = tpu.matmul %34, %6, %cst_46 {dimension_numbers = #tpu.dot_dimension_numbers<[1], [0], [0], [1], [0, 0, 1, 1], [], []>} : vector<2x8xf32>, vector<8x32xf32>, vector<2x32xf32> -> vector<2x32xf32>
    %cst_47 = arith.constant dense<0.000000e+00> : vector<2x32xf32>
    %42 = tpu.matmul %34, %8, %cst_47 {dimension_numbers = #tpu.dot_dimension_numbers<[1], [0], [0], [1], [0, 0, 1, 1], [], []>} : vector<2x8xf32>, vector<8x32xf32>, vector<2x32xf32> -> vector<2x32xf32>
    %43 = vector.broadcast %26 : vector<1x32xf32> to vector<2x32xf32>
    %44 = arith.addf %42, %43 : vector<2x32xf32>
    %45 = arith.addf %40, %35 : vector<2x32xf32>
    %46 = vector.broadcast %19 : vector<1x32xf32> to vector<2x32xf32>
    %47 = arith.addf %45, %46 : vector<2x32xf32>
    %48 = arith.negf %47 : vector<2x32xf32>
    %49 = math.exp %48 : vector<2x32xf32>
    %cst_48 = arith.constant 1.000000e+00 : f32
    %50 = vector.broadcast %cst_48 : f32 to vector<2x32xf32>
    %51 = arith.addf %50, %49 : vector<2x32xf32>
    %52 = arith.divf %50, %51 : vector<2x32xf32>
    %53 = arith.addf %41, %36 : vector<2x32xf32>
    %54 = vector.broadcast %24 : vector<1x32xf32> to vector<2x32xf32>
    %55 = arith.addf %53, %54 : vector<2x32xf32>
    %56 = arith.negf %55 : vector<2x32xf32>
    %57 = math.exp %56 : vector<2x32xf32>
    %cst_49 = arith.constant 1.000000e+00 : f32
    %58 = vector.broadcast %cst_49 : f32 to vector<2x32xf32>
    %59 = arith.addf %58, %57 : vector<2x32xf32>
    %60 = arith.divf %58, %59 : vector<2x32xf32>
    %61 = arith.mulf %52, %39 : vector<2x32xf32>
    %62 = arith.addf %44, %61 : vector<2x32xf32>
    %63 = math.tanh %62 : vector<2x32xf32>
    %cst_50 = arith.constant 1.000000e+00 : f32
    %64 = vector.broadcast %cst_50 : f32 to vector<2x32xf32>
    %65 = arith.subf %64, %60 : vector<2x32xf32>
    %66 = arith.mulf %65, %63 : vector<2x32xf32>
    %67 = arith.mulf %60, %31 : vector<2x32xf32>
    %68 = arith.addf %66, %67 : vector<2x32xf32>
    %cst_51 = arith.constant dense<0.000000e+00> : vector<2x16xf32>
    %69 = tpu.matmul %68, %29, %cst_51 {dimension_numbers = #tpu.dot_dimension_numbers<[1], [0], [0], [1], [0, 0, 1, 1], [], []>} : vector<2x32xf32>, vector<32x16xf32>, vector<2x16xf32> -> vector<2x16xf32>
    %70 = vector.broadcast %30 : vector<1x16xf32> to vector<2x16xf32>
    %71 = arith.addf %69, %70 : vector<2x16xf32>
    %72 = arith.index_cast %c0_i32_40 : i32 to index
    %c0_52 = arith.constant 0 : index
    %c0_53 = arith.constant 0 : index
    %73 = vector.load %arg8[%72, %c0_52, %c0_53] : memref<8x2x16xf32, #tpu.memory_space<vmem>>, vector<1x2x16xf32>
    %74 = vector.shape_cast %73 : vector<1x2x16xf32> to vector<2x16xf32>
    %75 = vector.shape_cast %71 : vector<2x16xf32> to vector<1x2x16xf32>
    tpu.vector_store %arg8[%72, %c0_52, %c0_53], %75 {strides = array<i32>} : memref<8x2x16xf32, #tpu.memory_space<vmem>>, vector<1x2x16xf32>,
    %c1_i32 = arith.constant 1 : i32
    %76 = arith.index_cast %c1_i32 : i32 to index
    %c0_54 = arith.constant 0 : index
    %c0_55 = arith.constant 0 : index
    %77 = vector.load %arg1[%76, %c0_54, %c0_55] : memref<8x2x8xf32, #tpu.memory_space<vmem>>, vector<1x2x8xf32>
    %78 = vector.shape_cast %77 : vector<1x2x8xf32> to vector<2x8xf32>
    %cst_56 = arith.constant dense<0.000000e+00> : vector<2x32xf32>
    %79 = tpu.matmul %68, %10, %cst_56 {dimension_numbers = #tpu.dot_dimension_numbers<[1], [0], [0], [1], [0, 0, 1, 1], [], []>} : vector<2x32xf32>, vector<32x32xf32>, vector<2x32xf32> -> vector<2x32xf32>
    %cst_57 = arith.constant dense<0.000000e+00> : vector<2x32xf32>
    %80 = tpu.matmul %68, %12, %cst_57 {dimension_numbers = #tpu.dot_dimension_numbers<[1], [0], [0], [1], [0, 0, 1, 1], [], []>} : vector<2x32xf32>, vector<32x32xf32>, vector<2x32xf32> -> vector<2x32xf32>
    %cst_58 = arith.constant dense<0.000000e+00> : vector<2x32xf32>
    %81 = tpu.matmul %68, %14, %cst_58 {dimension_numbers = #tpu.dot_dimension_numbers<[1], [0], [0], [1], [0, 0, 1, 1], [], []>} : vector<2x32xf32>, vector<32x32xf32>, vector<2x32xf32> -> vector<2x32xf32>
    %82 = vector.broadcast %28 : vector<1x32xf32> to vector<2x32xf32>
    %83 = arith.addf %81, %82 : vector<2x32xf32>
    %cst_59 = arith.constant dense<0.000000e+00> : vector<2x32xf32>
    %84 = tpu.matmul %78, %4, %cst_59 {dimension_numbers = #tpu.dot_dimension_numbers<[1], [0], [0], [1], [0, 0, 1, 1], [], []>} : vector<2x8xf32>, vector<8x32xf32>, vector<2x32xf32> -> vector<2x32xf32>
    %cst_60 = arith.constant dense<0.000000e+00> : vector<2x32xf32>
    %85 = tpu.matmul %78, %6, %cst_60 {dimension_numbers = #tpu.dot_dimension_numbers<[1], [0], [0], [1], [0, 0, 1, 1], [], []>} : vector<2x8xf32>, vector<8x32xf32>, vector<2x32xf32> -> vector<2x32xf32>
    %cst_61 = arith.constant dense<0.000000e+00> : vector<2x32xf32>
    %86 = tpu.matmul %78, %8, %cst_61 {dimension_numbers = #tpu.dot_dimension_numbers<[1], [0], [0], [1], [0, 0, 1, 1], [], []>} : vector<2x8xf32>, vector<8x32xf32>, vector<2x32xf32> -> vector<2x32xf32>
    %87 = vector.broadcast %26 : vector<1x32xf32> to vector<2x32xf32>
    %88 = arith.addf %86, %87 : vector<2x32xf32>
    %89 = arith.addf %84, %79 : vector<2x32xf32>
    %90 = vector.broadcast %19 : vector<1x32xf32> to vector<2x32xf32>
    %91 = arith.addf %89, %90 : vector<2x32xf32>
    %92 = arith.negf %91 : vector<2x32xf32>
    %93 = math.exp %92 : vector<2x32xf32>
    %cst_62 = arith.constant 1.000000e+00 : f32
    %94 = vector.broadcast %cst_62 : f32 to vector<2x32xf32>
    %95 = arith.addf %94, %93 : vector<2x32xf32>
    %96 = arith.divf %94, %95 : vector<2x32xf32>
    %97 = arith.addf %85, %80 : vector<2x32xf32>
    %98 = vector.broadcast %24 : vector<1x32xf32> to vector<2x32xf32>
    %99 = arith.addf %97, %98 : vector<2x32xf32>
    %100 = arith.negf %99 : vector<2x32xf32>
    %101 = math.exp %100 : vector<2x32xf32>
    %cst_63 = arith.constant 1.000000e+00 : f32
    %102 = vector.broadcast %cst_63 : f32 to vector<2x32xf32>
    %103 = arith.addf %102, %101 : vector<2x32xf32>
    %104 = arith.divf %102, %103 : vector<2x32xf32>
    %105 = arith.mulf %96, %83 : vector<2x32xf32>
    %106 = arith.addf %88, %105 : vector<2x32xf32>
    %107 = math.tanh %106 : vector<2x32xf32>
    %cst_64 = arith.constant 1.000000e+00 : f32
    %108 = vector.broadcast %cst_64 : f32 to vector<2x32xf32>
    %109 = arith.subf %108, %104 : vector<2x32xf32>
    %110 = arith.mulf %109, %107 : vector<2x32xf32>
    %111 = arith.mulf %104, %68 : vector<2x32xf32>
    %112 = arith.addf %110, %111 : vector<2x32xf32>
    %cst_65 = arith.constant dense<0.000000e+00> : vector<2x16xf32>
    %113 = tpu.matmul %112, %29, %cst_65 {dimension_numbers = #tpu.dot_dimension_numbers<[1], [0], [0], [1], [0, 0, 1, 1], [], []>} : vector<2x32xf32>, vector<32x16xf32>, vector<2x16xf32> -> vector<2x16xf32>
    %114 = vector.broadcast %30 : vector<1x16xf32> to vector<2x16xf32>
    %115 = arith.addf %113, %114 : vector<2x16xf32>
    %116 = arith.index_cast %c1_i32 : i32 to index
    %c0_66 = arith.constant 0 : index
    %c0_67 = arith.constant 0 : index
    %117 = vector.load %arg8[%116, %c0_66, %c0_67] : memref<8x2x16xf32, #tpu.memory_space<vmem>>, vector<1x2x16xf32>
    %118 = vector.shape_cast %117 : vector<1x2x16xf32> to vector<2x16xf32>
    %119 = vector.shape_cast %115 : vector<2x16xf32> to vector<1x2x16xf32>
    tpu.vector_store %arg8[%116, %c0_66, %c0_67], %119 {strides = array<i32>} : memref<8x2x16xf32, #tpu.memory_space<vmem>>, vector<1x2x16xf32>,
    %c2_i32 = arith.constant 2 : i32
    %120 = arith.index_cast %c2_i32 : i32 to index
    %c0_68 = arith.constant 0 : index
    %c0_69 = arith.constant 0 : index
    %121 = vector.load %arg1[%120, %c0_68, %c0_69] : memref<8x2x8xf32, #tpu.memory_space<vmem>>, vector<1x2x8xf32>
    %122 = vector.shape_cast %121 : vector<1x2x8xf32> to vector<2x8xf32>
    %cst_70 = arith.constant dense<0.000000e+00> : vector<2x32xf32>
    %123 = tpu.matmul %112, %10, %cst_70 {dimension_numbers = #tpu.dot_dimension_numbers<[1], [0], [0], [1], [0, 0, 1, 1], [], []>} : vector<2x32xf32>, vector<32x32xf32>, vector<2x32xf32> -> vector<2x32xf32>
    %cst_71 = arith.constant dense<0.000000e+00> : vector<2x32xf32>
    %124 = tpu.matmul %112, %12, %cst_71 {dimension_numbers = #tpu.dot_dimension_numbers<[1], [0], [0], [1], [0, 0, 1, 1], [], []>} : vector<2x32xf32>, vector<32x32xf32>, vector<2x32xf32> -> vector<2x32xf32>
    %cst_72 = arith.constant dense<0.000000e+00> : vector<2x32xf32>
    %125 = tpu.matmul %112, %14, %cst_72 {dimension_numbers = #tpu.dot_dimension_numbers<[1], [0], [0], [1], [0, 0, 1, 1], [], []>} : vector<2x32xf32>, vector<32x32xf32>, vector<2x32xf32> -> vector<2x32xf32>
    %126 = vector.broadcast %28 : vector<1x32xf32> to vector<2x32xf32>
    %127 = arith.addf %125, %126 : vector<2x32xf32>
    %cst_73 = arith.constant dense<0.000000e+00> : vector<2x32xf32>
    %128 = tpu.matmul %122, %4, %cst_73 {dimension_numbers = #tpu.dot_dimension_numbers<[1], [0], [0], [1], [0, 0, 1, 1], [], []>} : vector<2x8xf32>, vector<8x32xf32>, vector<2x32xf32> -> vector<2x32xf32>
    %cst_74 = arith.constant dense<0.000000e+00> : vector<2x32xf32>
    %129 = tpu.matmul %122, %6, %cst_74 {dimension_numbers = #tpu.dot_dimension_numbers<[1], [0], [0], [1], [0, 0, 1, 1], [], []>} : vector<2x8xf32>, vector<8x32xf32>, vector<2x32xf32> -> vector<2x32xf32>
    %cst_75 = arith.constant dense<0.000000e+00> : vector<2x32xf32>
    %130 = tpu.matmul %122, %8, %cst_75 {dimension_numbers = #tpu.dot_dimension_numbers<[1], [0], [0], [1], [0, 0, 1, 1], [], []>} : vector<2x8xf32>, vector<8x32xf32>, vector<2x32xf32> -> vector<2x32xf32>
    %131 = vector.broadcast %26 : vector<1x32xf32> to vector<2x32xf32>
    %132 = arith.addf %130, %131 : vector<2x32xf32>
    %133 = arith.addf %128, %123 : vector<2x32xf32>
    %134 = vector.broadcast %19 : vector<1x32xf32> to vector<2x32xf32>
    %135 = arith.addf %133, %134 : vector<2x32xf32>
    %136 = arith.negf %135 : vector<2x32xf32>
    %137 = math.exp %136 : vector<2x32xf32>
    %cst_76 = arith.constant 1.000000e+00 : f32
    %138 = vector.broadcast %cst_76 : f32 to vector<2x32xf32>
    %139 = arith.addf %138, %137 : vector<2x32xf32>
    %140 = arith.divf %138, %139 : vector<2x32xf32>
    %141 = arith.addf %129, %124 : vector<2x32xf32>
    %142 = vector.broadcast %24 : vector<1x32xf32> to vector<2x32xf32>
    %143 = arith.addf %141, %142 : vector<2x32xf32>
    %144 = arith.negf %143 : vector<2x32xf32>
    %145 = math.exp %144 : vector<2x32xf32>
    %cst_77 = arith.constant 1.000000e+00 : f32
    %146 = vector.broadcast %cst_77 : f32 to vector<2x32xf32>
    %147 = arith.addf %146, %145 : vector<2x32xf32>
    %148 = arith.divf %146, %147 : vector<2x32xf32>
    %149 = arith.mulf %140, %127 : vector<2x32xf32>
    %150 = arith.addf %132, %149 : vector<2x32xf32>
    %151 = math.tanh %150 : vector<2x32xf32>
    %cst_78 = arith.constant 1.000000e+00 : f32
    %152 = vector.broadcast %cst_78 : f32 to vector<2x32xf32>
    %153 = arith.subf %152, %148 : vector<2x32xf32>
    %154 = arith.mulf %153, %151 : vector<2x32xf32>
    %155 = arith.mulf %148, %112 : vector<2x32xf32>
    %156 = arith.addf %154, %155 : vector<2x32xf32>
    %cst_79 = arith.constant dense<0.000000e+00> : vector<2x16xf32>
    %157 = tpu.matmul %156, %29, %cst_79 {dimension_numbers = #tpu.dot_dimension_numbers<[1], [0], [0], [1], [0, 0, 1, 1], [], []>} : vector<2x32xf32>, vector<32x16xf32>, vector<2x16xf32> -> vector<2x16xf32>
    %158 = vector.broadcast %30 : vector<1x16xf32> to vector<2x16xf32>
    %159 = arith.addf %157, %158 : vector<2x16xf32>
    %160 = arith.index_cast %c2_i32 : i32 to index
    %c0_80 = arith.constant 0 : index
    %c0_81 = arith.constant 0 : index
    %161 = vector.load %arg8[%160, %c0_80, %c0_81] : memref<8x2x16xf32, #tpu.memory_space<vmem>>, vector<1x2x16xf32>
    %162 = vector.shape_cast %161 : vector<1x2x16xf32> to vector<2x16xf32>
    %163 = vector.shape_cast %159 : vector<2x16xf32> to vector<1x2x16xf32>
    tpu.vector_store %arg8[%160, %c0_80, %c0_81], %163 {strides = array<i32>} : memref<8x2x16xf32, #tpu.memory_space<vmem>>, vector<1x2x16xf32>,
    %c3_i32 = arith.constant 3 : i32
    %164 = arith.index_cast %c3_i32 : i32 to index
    %c0_82 = arith.constant 0 : index
    %c0_83 = arith.constant 0 : index
    %165 = vector.load %arg1[%164, %c0_82, %c0_83] : memref<8x2x8xf32, #tpu.memory_space<vmem>>, vector<1x2x8xf32>
    %166 = vector.shape_cast %165 : vector<1x2x8xf32> to vector<2x8xf32>
    %cst_84 = arith.constant dense<0.000000e+00> : vector<2x32xf32>
    %167 = tpu.matmul %156, %10, %cst_84 {dimension_numbers = #tpu.dot_dimension_numbers<[1], [0], [0], [1], [0, 0, 1, 1], [], []>} : vector<2x32xf32>, vector<32x32xf32>, vector<2x32xf32> -> vector<2x32xf32>
    %cst_85 = arith.constant dense<0.000000e+00> : vector<2x32xf32>
    %168 = tpu.matmul %156, %12, %cst_85 {dimension_numbers = #tpu.dot_dimension_numbers<[1], [0], [0], [1], [0, 0, 1, 1], [], []>} : vector<2x32xf32>, vector<32x32xf32>, vector<2x32xf32> -> vector<2x32xf32>
    %cst_86 = arith.constant dense<0.000000e+00> : vector<2x32xf32>
    %169 = tpu.matmul %156, %14, %cst_86 {dimension_numbers = #tpu.dot_dimension_numbers<[1], [0], [0], [1], [0, 0, 1, 1], [], []>} : vector<2x32xf32>, vector<32x32xf32>, vector<2x32xf32> -> vector<2x32xf32>
    %170 = vector.broadcast %28 : vector<1x32xf32> to vector<2x32xf32>
    %171 = arith.addf %169, %170 : vector<2x32xf32>
    %cst_87 = arith.constant dense<0.000000e+00> : vector<2x32xf32>
    %172 = tpu.matmul %166, %4, %cst_87 {dimension_numbers = #tpu.dot_dimension_numbers<[1], [0], [0], [1], [0, 0, 1, 1], [], []>} : vector<2x8xf32>, vector<8x32xf32>, vector<2x32xf32> -> vector<2x32xf32>
    %cst_88 = arith.constant dense<0.000000e+00> : vector<2x32xf32>
    %173 = tpu.matmul %166, %6, %cst_88 {dimension_numbers = #tpu.dot_dimension_numbers<[1], [0], [0], [1], [0, 0, 1, 1], [], []>} : vector<2x8xf32>, vector<8x32xf32>, vector<2x32xf32> -> vector<2x32xf32>
    %cst_89 = arith.constant dense<0.000000e+00> : vector<2x32xf32>
    %174 = tpu.matmul %166, %8, %cst_89 {dimension_numbers = #tpu.dot_dimension_numbers<[1], [0], [0], [1], [0, 0, 1, 1], [], []>} : vector<2x8xf32>, vector<8x32xf32>, vector<2x32xf32> -> vector<2x32xf32>
    %175 = vector.broadcast %26 : vector<1x32xf32> to vector<2x32xf32>
    %176 = arith.addf %174, %175 : vector<2x32xf32>
    %177 = arith.addf %172, %167 : vector<2x32xf32>
    %178 = vector.broadcast %19 : vector<1x32xf32> to vector<2x32xf32>
    %179 = arith.addf %177, %178 : vector<2x32xf32>
    %180 = arith.negf %179 : vector<2x32xf32>
    %181 = math.exp %180 : vector<2x32xf32>
    %cst_90 = arith.constant 1.000000e+00 : f32
    %182 = vector.broadcast %cst_90 : f32 to vector<2x32xf32>
    %183 = arith.addf %182, %181 : vector<2x32xf32>
    %184 = arith.divf %182, %183 : vector<2x32xf32>
    %185 = arith.addf %173, %168 : vector<2x32xf32>
    %186 = vector.broadcast %24 : vector<1x32xf32> to vector<2x32xf32>
    %187 = arith.addf %185, %186 : vector<2x32xf32>
    %188 = arith.negf %187 : vector<2x32xf32>
    %189 = math.exp %188 : vector<2x32xf32>
    %cst_91 = arith.constant 1.000000e+00 : f32
    %190 = vector.broadcast %cst_91 : f32 to vector<2x32xf32>
    %191 = arith.addf %190, %189 : vector<2x32xf32>
    %192 = arith.divf %190, %191 : vector<2x32xf32>
    %193 = arith.mulf %184, %171 : vector<2x32xf32>
    %194 = arith.addf %176, %193 : vector<2x32xf32>
    %195 = math.tanh %194 : vector<2x32xf32>
    %cst_92 = arith.constant 1.000000e+00 : f32
    %196 = vector.broadcast %cst_92 : f32 to vector<2x32xf32>
    %197 = arith.subf %196, %192 : vector<2x32xf32>
    %198 = arith.mulf %197, %195 : vector<2x32xf32>
    %199 = arith.mulf %192, %156 : vector<2x32xf32>
    %200 = arith.addf %198, %199 : vector<2x32xf32>
    %cst_93 = arith.constant dense<0.000000e+00> : vector<2x16xf32>
    %201 = tpu.matmul %200, %29, %cst_93 {dimension_numbers = #tpu.dot_dimension_numbers<[1], [0], [0], [1], [0, 0, 1, 1], [], []>} : vector<2x32xf32>, vector<32x16xf32>, vector<2x16xf32> -> vector<2x16xf32>
    %202 = vector.broadcast %30 : vector<1x16xf32> to vector<2x16xf32>
    %203 = arith.addf %201, %202 : vector<2x16xf32>
    %204 = arith.index_cast %c3_i32 : i32 to index
    %c0_94 = arith.constant 0 : index
    %c0_95 = arith.constant 0 : index
    %205 = vector.load %arg8[%204, %c0_94, %c0_95] : memref<8x2x16xf32, #tpu.memory_space<vmem>>, vector<1x2x16xf32>
    %206 = vector.shape_cast %205 : vector<1x2x16xf32> to vector<2x16xf32>
    %207 = vector.shape_cast %203 : vector<2x16xf32> to vector<1x2x16xf32>
    tpu.vector_store %arg8[%204, %c0_94, %c0_95], %207 {strides = array<i32>} : memref<8x2x16xf32, #tpu.memory_space<vmem>>, vector<1x2x16xf32>,
    %c4_i32 = arith.constant 4 : i32
    %208 = arith.index_cast %c4_i32 : i32 to index
    %c0_96 = arith.constant 0 : index
    %c0_97 = arith.constant 0 : index
    %209 = vector.load %arg1[%208, %c0_96, %c0_97] : memref<8x2x8xf32, #tpu.memory_space<vmem>>, vector<1x2x8xf32>
    %210 = vector.shape_cast %209 : vector<1x2x8xf32> to vector<2x8xf32>
    %cst_98 = arith.constant dense<0.000000e+00> : vector<2x32xf32>
    %211 = tpu.matmul %200, %10, %cst_98 {dimension_numbers = #tpu.dot_dimension_numbers<[1], [0], [0], [1], [0, 0, 1, 1], [], []>} : vector<2x32xf32>, vector<32x32xf32>, vector<2x32xf32> -> vector<2x32xf32>
    %cst_99 = arith.constant dense<0.000000e+00> : vector<2x32xf32>
    %212 = tpu.matmul %200, %12, %cst_99 {dimension_numbers = #tpu.dot_dimension_numbers<[1], [0], [0], [1], [0, 0, 1, 1], [], []>} : vector<2x32xf32>, vector<32x32xf32>, vector<2x32xf32> -> vector<2x32xf32>
    %cst_100 = arith.constant dense<0.000000e+00> : vector<2x32xf32>
    %213 = tpu.matmul %200, %14, %cst_100 {dimension_numbers = #tpu.dot_dimension_numbers<[1], [0], [0], [1], [0, 0, 1, 1], [], []>} : vector<2x32xf32>, vector<32x32xf32>, vector<2x32xf32> -> vector<2x32xf32>
    %214 = vector.broadcast %28 : vector<1x32xf32> to vector<2x32xf32>
    %215 = arith.addf %213, %214 : vector<2x32xf32>
    %cst_101 = arith.constant dense<0.000000e+00> : vector<2x32xf32>
    %216 = tpu.matmul %210, %4, %cst_101 {dimension_numbers = #tpu.dot_dimension_numbers<[1], [0], [0], [1], [0, 0, 1, 1], [], []>} : vector<2x8xf32>, vector<8x32xf32>, vector<2x32xf32> -> vector<2x32xf32>
    %cst_102 = arith.constant dense<0.000000e+00> : vector<2x32xf32>
    %217 = tpu.matmul %210, %6, %cst_102 {dimension_numbers = #tpu.dot_dimension_numbers<[1], [0], [0], [1], [0, 0, 1, 1], [], []>} : vector<2x8xf32>, vector<8x32xf32>, vector<2x32xf32> -> vector<2x32xf32>
    %cst_103 = arith.constant dense<0.000000e+00> : vector<2x32xf32>
    %218 = tpu.matmul %210, %8, %cst_103 {dimension_numbers = #tpu.dot_dimension_numbers<[1], [0], [0], [1], [0, 0, 1, 1], [], []>} : vector<2x8xf32>, vector<8x32xf32>, vector<2x32xf32> -> vector<2x32xf32>
    %219 = vector.broadcast %26 : vector<1x32xf32> to vector<2x32xf32>
    %220 = arith.addf %218, %219 : vector<2x32xf32>
    %221 = arith.addf %216, %211 : vector<2x32xf32>
    %222 = vector.broadcast %19 : vector<1x32xf32> to vector<2x32xf32>
    %223 = arith.addf %221, %222 : vector<2x32xf32>
    %224 = arith.negf %223 : vector<2x32xf32>
    %225 = math.exp %224 : vector<2x32xf32>
    %cst_104 = arith.constant 1.000000e+00 : f32
    %226 = vector.broadcast %cst_104 : f32 to vector<2x32xf32>
    %227 = arith.addf %226, %225 : vector<2x32xf32>
    %228 = arith.divf %226, %227 : vector<2x32xf32>
    %229 = arith.addf %217, %212 : vector<2x32xf32>
    %230 = vector.broadcast %24 : vector<1x32xf32> to vector<2x32xf32>
    %231 = arith.addf %229, %230 : vector<2x32xf32>
    %232 = arith.negf %231 : vector<2x32xf32>
    %233 = math.exp %232 : vector<2x32xf32>
    %cst_105 = arith.constant 1.000000e+00 : f32
    %234 = vector.broadcast %cst_105 : f32 to vector<2x32xf32>
    %235 = arith.addf %234, %233 : vector<2x32xf32>
    %236 = arith.divf %234, %235 : vector<2x32xf32>
    %237 = arith.mulf %228, %215 : vector<2x32xf32>
    %238 = arith.addf %220, %237 : vector<2x32xf32>
    %239 = math.tanh %238 : vector<2x32xf32>
    %cst_106 = arith.constant 1.000000e+00 : f32
    %240 = vector.broadcast %cst_106 : f32 to vector<2x32xf32>
    %241 = arith.subf %240, %236 : vector<2x32xf32>
    %242 = arith.mulf %241, %239 : vector<2x32xf32>
    %243 = arith.mulf %236, %200 : vector<2x32xf32>
    %244 = arith.addf %242, %243 : vector<2x32xf32>
    %cst_107 = arith.constant dense<0.000000e+00> : vector<2x16xf32>
    %245 = tpu.matmul %244, %29, %cst_107 {dimension_numbers = #tpu.dot_dimension_numbers<[1], [0], [0], [1], [0, 0, 1, 1], [], []>} : vector<2x32xf32>, vector<32x16xf32>, vector<2x16xf32> -> vector<2x16xf32>
    %246 = vector.broadcast %30 : vector<1x16xf32> to vector<2x16xf32>
    %247 = arith.addf %245, %246 : vector<2x16xf32>
    %248 = arith.index_cast %c4_i32 : i32 to index
    %c0_108 = arith.constant 0 : index
    %c0_109 = arith.constant 0 : index
    %249 = vector.load %arg8[%248, %c0_108, %c0_109] : memref<8x2x16xf32, #tpu.memory_space<vmem>>, vector<1x2x16xf32>
    %250 = vector.shape_cast %249 : vector<1x2x16xf32> to vector<2x16xf32>
    %251 = vector.shape_cast %247 : vector<2x16xf32> to vector<1x2x16xf32>
    tpu.vector_store %arg8[%248, %c0_108, %c0_109], %251 {strides = array<i32>} : memref<8x2x16xf32, #tpu.memory_space<vmem>>, vector<1x2x16xf32>,
    %c5_i32 = arith.constant 5 : i32
    %252 = arith.index_cast %c5_i32 : i32 to index
    %c0_110 = arith.constant 0 : index
    %c0_111 = arith.constant 0 : index
    %253 = vector.load %arg1[%252, %c0_110, %c0_111] : memref<8x2x8xf32, #tpu.memory_space<vmem>>, vector<1x2x8xf32>
    %254 = vector.shape_cast %253 : vector<1x2x8xf32> to vector<2x8xf32>
    %cst_112 = arith.constant dense<0.000000e+00> : vector<2x32xf32>
    %255 = tpu.matmul %244, %10, %cst_112 {dimension_numbers = #tpu.dot_dimension_numbers<[1], [0], [0], [1], [0, 0, 1, 1], [], []>} : vector<2x32xf32>, vector<32x32xf32>, vector<2x32xf32> -> vector<2x32xf32>
    %cst_113 = arith.constant dense<0.000000e+00> : vector<2x32xf32>
    %256 = tpu.matmul %244, %12, %cst_113 {dimension_numbers = #tpu.dot_dimension_numbers<[1], [0], [0], [1], [0, 0, 1, 1], [], []>} : vector<2x32xf32>, vector<32x32xf32>, vector<2x32xf32> -> vector<2x32xf32>
    %cst_114 = arith.constant dense<0.000000e+00> : vector<2x32xf32>
    %257 = tpu.matmul %244, %14, %cst_114 {dimension_numbers = #tpu.dot_dimension_numbers<[1], [0], [0], [1], [0, 0, 1, 1], [], []>} : vector<2x32xf32>, vector<32x32xf32>, vector<2x32xf32> -> vector<2x32xf32>
    %258 = vector.broadcast %28 : vector<1x32xf32> to vector<2x32xf32>
    %259 = arith.addf %257, %258 : vector<2x32xf32>
    %cst_115 = arith.constant dense<0.000000e+00> : vector<2x32xf32>
    %260 = tpu.matmul %254, %4, %cst_115 {dimension_numbers = #tpu.dot_dimension_numbers<[1], [0], [0], [1], [0, 0, 1, 1], [], []>} : vector<2x8xf32>, vector<8x32xf32>, vector<2x32xf32> -> vector<2x32xf32>
    %cst_116 = arith.constant dense<0.000000e+00> : vector<2x32xf32>
    %261 = tpu.matmul %254, %6, %cst_116 {dimension_numbers = #tpu.dot_dimension_numbers<[1], [0], [0], [1], [0, 0, 1, 1], [], []>} : vector<2x8xf32>, vector<8x32xf32>, vector<2x32xf32> -> vector<2x32xf32>
    %cst_117 = arith.constant dense<0.000000e+00> : vector<2x32xf32>
    %262 = tpu.matmul %254, %8, %cst_117 {dimension_numbers = #tpu.dot_dimension_numbers<[1], [0], [0], [1], [0, 0, 1, 1], [], []>} : vector<2x8xf32>, vector<8x32xf32>, vector<2x32xf32> -> vector<2x32xf32>
    %263 = vector.broadcast %26 : vector<1x32xf32> to vector<2x32xf32>
    %264 = arith.addf %262, %263 : vector<2x32xf32>
    %265 = arith.addf %260, %255 : vector<2x32xf32>
    %266 = vector.broadcast %19 : vector<1x32xf32> to vector<2x32xf32>
    %267 = arith.addf %265, %266 : vector<2x32xf32>
    %268 = arith.negf %267 : vector<2x32xf32>
    %269 = math.exp %268 : vector<2x32xf32>
    %cst_118 = arith.constant 1.000000e+00 : f32
    %270 = vector.broadcast %cst_118 : f32 to vector<2x32xf32>
    %271 = arith.addf %270, %269 : vector<2x32xf32>
    %272 = arith.divf %270, %271 : vector<2x32xf32>
    %273 = arith.addf %261, %256 : vector<2x32xf32>
    %274 = vector.broadcast %24 : vector<1x32xf32> to vector<2x32xf32>
    %275 = arith.addf %273, %274 : vector<2x32xf32>
    %276 = arith.negf %275 : vector<2x32xf32>
    %277 = math.exp %276 : vector<2x32xf32>
    %cst_119 = arith.constant 1.000000e+00 : f32
    %278 = vector.broadcast %cst_119 : f32 to vector<2x32xf32>
    %279 = arith.addf %278, %277 : vector<2x32xf32>
    %280 = arith.divf %278, %279 : vector<2x32xf32>
    %281 = arith.mulf %272, %259 : vector<2x32xf32>
    %282 = arith.addf %264, %281 : vector<2x32xf32>
    %283 = math.tanh %282 : vector<2x32xf32>
    %cst_120 = arith.constant 1.000000e+00 : f32
    %284 = vector.broadcast %cst_120 : f32 to vector<2x32xf32>
    %285 = arith.subf %284, %280 : vector<2x32xf32>
    %286 = arith.mulf %285, %283 : vector<2x32xf32>
    %287 = arith.mulf %280, %244 : vector<2x32xf32>
    %288 = arith.addf %286, %287 : vector<2x32xf32>
    %cst_121 = arith.constant dense<0.000000e+00> : vector<2x16xf32>
    %289 = tpu.matmul %288, %29, %cst_121 {dimension_numbers = #tpu.dot_dimension_numbers<[1], [0], [0], [1], [0, 0, 1, 1], [], []>} : vector<2x32xf32>, vector<32x16xf32>, vector<2x16xf32> -> vector<2x16xf32>
    %290 = vector.broadcast %30 : vector<1x16xf32> to vector<2x16xf32>
    %291 = arith.addf %289, %290 : vector<2x16xf32>
    %292 = arith.index_cast %c5_i32 : i32 to index
    %c0_122 = arith.constant 0 : index
    %c0_123 = arith.constant 0 : index
    %293 = vector.load %arg8[%292, %c0_122, %c0_123] : memref<8x2x16xf32, #tpu.memory_space<vmem>>, vector<1x2x16xf32>
    %294 = vector.shape_cast %293 : vector<1x2x16xf32> to vector<2x16xf32>
    %295 = vector.shape_cast %291 : vector<2x16xf32> to vector<1x2x16xf32>
    tpu.vector_store %arg8[%292, %c0_122, %c0_123], %295 {strides = array<i32>} : memref<8x2x16xf32, #tpu.memory_space<vmem>>, vector<1x2x16xf32>,
    %c6_i32 = arith.constant 6 : i32
    %296 = arith.index_cast %c6_i32 : i32 to index
    %c0_124 = arith.constant 0 : index
    %c0_125 = arith.constant 0 : index
    %297 = vector.load %arg1[%296, %c0_124, %c0_125] : memref<8x2x8xf32, #tpu.memory_space<vmem>>, vector<1x2x8xf32>
    %298 = vector.shape_cast %297 : vector<1x2x8xf32> to vector<2x8xf32>
    %cst_126 = arith.constant dense<0.000000e+00> : vector<2x32xf32>
    %299 = tpu.matmul %288, %10, %cst_126 {dimension_numbers = #tpu.dot_dimension_numbers<[1], [0], [0], [1], [0, 0, 1, 1], [], []>} : vector<2x32xf32>, vector<32x32xf32>, vector<2x32xf32> -> vector<2x32xf32>
    %cst_127 = arith.constant dense<0.000000e+00> : vector<2x32xf32>
    %300 = tpu.matmul %288, %12, %cst_127 {dimension_numbers = #tpu.dot_dimension_numbers<[1], [0], [0], [1], [0, 0, 1, 1], [], []>} : vector<2x32xf32>, vector<32x32xf32>, vector<2x32xf32> -> vector<2x32xf32>
    %cst_128 = arith.constant dense<0.000000e+00> : vector<2x32xf32>
    %301 = tpu.matmul %288, %14, %cst_128 {dimension_numbers = #tpu.dot_dimension_numbers<[1], [0], [0], [1], [0, 0, 1, 1], [], []>} : vector<2x32xf32>, vector<32x32xf32>, vector<2x32xf32> -> vector<2x32xf32>
    %302 = vector.broadcast %28 : vector<1x32xf32> to vector<2x32xf32>
    %303 = arith.addf %301, %302 : vector<2x32xf32>
    %cst_129 = arith.constant dense<0.000000e+00> : vector<2x32xf32>
    %304 = tpu.matmul %298, %4, %cst_129 {dimension_numbers = #tpu.dot_dimension_numbers<[1], [0], [0], [1], [0, 0, 1, 1], [], []>} : vector<2x8xf32>, vector<8x32xf32>, vector<2x32xf32> -> vector<2x32xf32>
    %cst_130 = arith.constant dense<0.000000e+00> : vector<2x32xf32>
    %305 = tpu.matmul %298, %6, %cst_130 {dimension_numbers = #tpu.dot_dimension_numbers<[1], [0], [0], [1], [0, 0, 1, 1], [], []>} : vector<2x8xf32>, vector<8x32xf32>, vector<2x32xf32> -> vector<2x32xf32>
    %cst_131 = arith.constant dense<0.000000e+00> : vector<2x32xf32>
    %306 = tpu.matmul %298, %8, %cst_131 {dimension_numbers = #tpu.dot_dimension_numbers<[1], [0], [0], [1], [0, 0, 1, 1], [], []>} : vector<2x8xf32>, vector<8x32xf32>, vector<2x32xf32> -> vector<2x32xf32>
    %307 = vector.broadcast %26 : vector<1x32xf32> to vector<2x32xf32>
    %308 = arith.addf %306, %307 : vector<2x32xf32>
    %309 = arith.addf %304, %299 : vector<2x32xf32>
    %310 = vector.broadcast %19 : vector<1x32xf32> to vector<2x32xf32>
    %311 = arith.addf %309, %310 : vector<2x32xf32>
    %312 = arith.negf %311 : vector<2x32xf32>
    %313 = math.exp %312 : vector<2x32xf32>
    %cst_132 = arith.constant 1.000000e+00 : f32
    %314 = vector.broadcast %cst_132 : f32 to vector<2x32xf32>
    %315 = arith.addf %314, %313 : vector<2x32xf32>
    %316 = arith.divf %314, %315 : vector<2x32xf32>
    %317 = arith.addf %305, %300 : vector<2x32xf32>
    %318 = vector.broadcast %24 : vector<1x32xf32> to vector<2x32xf32>
    %319 = arith.addf %317, %318 : vector<2x32xf32>
    %320 = arith.negf %319 : vector<2x32xf32>
    %321 = math.exp %320 : vector<2x32xf32>
    %cst_133 = arith.constant 1.000000e+00 : f32
    %322 = vector.broadcast %cst_133 : f32 to vector<2x32xf32>
    %323 = arith.addf %322, %321 : vector<2x32xf32>
    %324 = arith.divf %322, %323 : vector<2x32xf32>
    %325 = arith.mulf %316, %303 : vector<2x32xf32>
    %326 = arith.addf %308, %325 : vector<2x32xf32>
    %327 = math.tanh %326 : vector<2x32xf32>
    %cst_134 = arith.constant 1.000000e+00 : f32
    %328 = vector.broadcast %cst_134 : f32 to vector<2x32xf32>
    %329 = arith.subf %328, %324 : vector<2x32xf32>
    %330 = arith.mulf %329, %327 : vector<2x32xf32>
    %331 = arith.mulf %324, %288 : vector<2x32xf32>
    %332 = arith.addf %330, %331 : vector<2x32xf32>
    %cst_135 = arith.constant dense<0.000000e+00> : vector<2x16xf32>
    %333 = tpu.matmul %332, %29, %cst_135 {dimension_numbers = #tpu.dot_dimension_numbers<[1], [0], [0], [1], [0, 0, 1, 1], [], []>} : vector<2x32xf32>, vector<32x16xf32>, vector<2x16xf32> -> vector<2x16xf32>
    %334 = vector.broadcast %30 : vector<1x16xf32> to vector<2x16xf32>
    %335 = arith.addf %333, %334 : vector<2x16xf32>
    %336 = arith.index_cast %c6_i32 : i32 to index
    %c0_136 = arith.constant 0 : index
    %c0_137 = arith.constant 0 : index
    %337 = vector.load %arg8[%336, %c0_136, %c0_137] : memref<8x2x16xf32, #tpu.memory_space<vmem>>, vector<1x2x16xf32>
    %338 = vector.shape_cast %337 : vector<1x2x16xf32> to vector<2x16xf32>
    %339 = vector.shape_cast %335 : vector<2x16xf32> to vector<1x2x16xf32>
    tpu.vector_store %arg8[%336, %c0_136, %c0_137], %339 {strides = array<i32>} : memref<8x2x16xf32, #tpu.memory_space<vmem>>, vector<1x2x16xf32>,
    %c7_i32 = arith.constant 7 : i32
    %340 = arith.index_cast %c7_i32 : i32 to index
    %c0_138 = arith.constant 0 : index
    %c0_139 = arith.constant 0 : index
    %341 = vector.load %arg1[%340, %c0_138, %c0_139] : memref<8x2x8xf32, #tpu.memory_space<vmem>>, vector<1x2x8xf32>
    %342 = vector.shape_cast %341 : vector<1x2x8xf32> to vector<2x8xf32>
    %cst_140 = arith.constant dense<0.000000e+00> : vector<2x32xf32>
    %343 = tpu.matmul %332, %10, %cst_140 {dimension_numbers = #tpu.dot_dimension_numbers<[1], [0], [0], [1], [0, 0, 1, 1], [], []>} : vector<2x32xf32>, vector<32x32xf32>, vector<2x32xf32> -> vector<2x32xf32>
    %cst_141 = arith.constant dense<0.000000e+00> : vector<2x32xf32>
    %344 = tpu.matmul %332, %12, %cst_141 {dimension_numbers = #tpu.dot_dimension_numbers<[1], [0], [0], [1], [0, 0, 1, 1], [], []>} : vector<2x32xf32>, vector<32x32xf32>, vector<2x32xf32> -> vector<2x32xf32>
    %cst_142 = arith.constant dense<0.000000e+00> : vector<2x32xf32>
    %345 = tpu.matmul %332, %14, %cst_142 {dimension_numbers = #tpu.dot_dimension_numbers<[1], [0], [0], [1], [0, 0, 1, 1], [], []>} : vector<2x32xf32>, vector<32x32xf32>, vector<2x32xf32> -> vector<2x32xf32>
    %346 = vector.broadcast %28 : vector<1x32xf32> to vector<2x32xf32>
    %347 = arith.addf %345, %346 : vector<2x32xf32>
    %cst_143 = arith.constant dense<0.000000e+00> : vector<2x32xf32>
    %348 = tpu.matmul %342, %4, %cst_143 {dimension_numbers = #tpu.dot_dimension_numbers<[1], [0], [0], [1], [0, 0, 1, 1], [], []>} : vector<2x8xf32>, vector<8x32xf32>, vector<2x32xf32> -> vector<2x32xf32>
    %cst_144 = arith.constant dense<0.000000e+00> : vector<2x32xf32>
    %349 = tpu.matmul %342, %6, %cst_144 {dimension_numbers = #tpu.dot_dimension_numbers<[1], [0], [0], [1], [0, 0, 1, 1], [], []>} : vector<2x8xf32>, vector<8x32xf32>, vector<2x32xf32> -> vector<2x32xf32>
    %cst_145 = arith.constant dense<0.000000e+00> : vector<2x32xf32>
    %350 = tpu.matmul %342, %8, %cst_145 {dimension_numbers = #tpu.dot_dimension_numbers<[1], [0], [0], [1], [0, 0, 1, 1], [], []>} : vector<2x8xf32>, vector<8x32xf32>, vector<2x32xf32> -> vector<2x32xf32>
    %351 = vector.broadcast %26 : vector<1x32xf32> to vector<2x32xf32>
    %352 = arith.addf %350, %351 : vector<2x32xf32>
    %353 = arith.addf %348, %343 : vector<2x32xf32>
    %354 = vector.broadcast %19 : vector<1x32xf32> to vector<2x32xf32>
    %355 = arith.addf %353, %354 : vector<2x32xf32>
    %356 = arith.negf %355 : vector<2x32xf32>
    %357 = math.exp %356 : vector<2x32xf32>
    %cst_146 = arith.constant 1.000000e+00 : f32
    %358 = vector.broadcast %cst_146 : f32 to vector<2x32xf32>
    %359 = arith.addf %358, %357 : vector<2x32xf32>
    %360 = arith.divf %358, %359 : vector<2x32xf32>
    %361 = arith.addf %349, %344 : vector<2x32xf32>
    %362 = vector.broadcast %24 : vector<1x32xf32> to vector<2x32xf32>
    %363 = arith.addf %361, %362 : vector<2x32xf32>
    %364 = arith.negf %363 : vector<2x32xf32>
    %365 = math.exp %364 : vector<2x32xf32>
    %cst_147 = arith.constant 1.000000e+00 : f32
    %366 = vector.broadcast %cst_147 : f32 to vector<2x32xf32>
    %367 = arith.addf %366, %365 : vector<2x32xf32>
    %368 = arith.divf %366, %367 : vector<2x32xf32>
    %369 = arith.mulf %360, %347 : vector<2x32xf32>
    %370 = arith.addf %352, %369 : vector<2x32xf32>
    %371 = math.tanh %370 : vector<2x32xf32>
    %cst_148 = arith.constant 1.000000e+00 : f32
    %372 = vector.broadcast %cst_148 : f32 to vector<2x32xf32>
    %373 = arith.subf %372, %368 : vector<2x32xf32>
    %374 = arith.mulf %373, %371 : vector<2x32xf32>
    %375 = arith.mulf %368, %332 : vector<2x32xf32>
    %376 = arith.addf %374, %375 : vector<2x32xf32>
    %cst_149 = arith.constant dense<0.000000e+00> : vector<2x16xf32>
    %377 = tpu.matmul %376, %29, %cst_149 {dimension_numbers = #tpu.dot_dimension_numbers<[1], [0], [0], [1], [0, 0, 1, 1], [], []>} : vector<2x32xf32>, vector<32x16xf32>, vector<2x16xf32> -> vector<2x16xf32>
    %378 = vector.broadcast %30 : vector<1x16xf32> to vector<2x16xf32>
    %379 = arith.addf %377, %378 : vector<2x16xf32>
    %380 = arith.index_cast %c7_i32 : i32 to index
    %c0_150 = arith.constant 0 : index
    %c0_151 = arith.constant 0 : index
    %381 = vector.load %arg8[%380, %c0_150, %c0_151] : memref<8x2x16xf32, #tpu.memory_space<vmem>>, vector<1x2x16xf32>
    %382 = vector.shape_cast %381 : vector<1x2x16xf32> to vector<2x16xf32>
    %383 = vector.shape_cast %379 : vector<2x16xf32> to vector<1x2x16xf32>
    tpu.vector_store %arg8[%380, %c0_150, %c0_151], %383 {strides = array<i32>} : memref<8x2x16xf32, #tpu.memory_space<vmem>>, vector<1x2x16xf32>,
    %c8_i32 = arith.constant 8 : i32
    %c0_152 = arith.constant 0 : index
    %c0_153 = arith.constant 0 : index
    %384 = vector.load %arg10[%c0_152, %c0_153] : memref<2x32xf32, #tpu.memory_space<vmem>>, vector<2x32xf32>
    tpu.vector_store %arg10[%c0_152, %c0_153], %376 {strides = array<i32>} : memref<2x32xf32, #tpu.memory_space<vmem>>, vector<2x32xf32>,
    %c0_i32_154 = arith.constant 0 : i32
    %385 = arith.cmpi eq, %arg0, %c0_i32_154 : i32
    %386 = arith.extui %385 : i1 to i32
    %c0_i32_155 = arith.constant 0 : i32
    %387 = arith.cmpi ne, %386, %c0_i32_155 : i32
    scf.if %387 {
      %c0_156 = arith.constant 0 : index
      %c0_157 = arith.constant 0 : index
      %388 = vector.load %arg9[%c0_156, %c0_157] : memref<2x32xf32, #tpu.memory_space<vmem>>, vector<2x32xf32>
      tpu.vector_store %arg9[%c0_156, %c0_157], %376 {strides = array<i32>} : memref<2x32xf32, #tpu.memory_space<vmem>>, vector<2x32xf32>,
    } else {
    }
    return
  }
  func.func @transform_0(%arg0: i32) -> (i32, i32, i32) {
    %c0_i32 = arith.constant 0 : i32
    %c0_i32_0 = arith.constant 0 : i32
    %c0_i32_1 = arith.constant 0 : i32
    return %arg0, %c0_i32, %c0_i32_0 : i32, i32, i32
  }
  func.func @transform_1(%arg0: i32) -> (i32, i32, i32) {
    %c0_i32 = arith.constant 0 : i32
    %c0_i32_0 = arith.constant 0 : i32
    %c0_i32_1 = arith.constant 0 : i32
    %c0_i32_2 = arith.constant 0 : i32
    return %c0_i32, %c0_i32_0, %c0_i32_1 : i32, i32, i32
  }
  func.func @transform_2(%arg0: i32) -> (i32, i32, i32) {
    %c0_i32 = arith.constant 0 : i32
    %c0_i32_0 = arith.constant 0 : i32
    %c0_i32_1 = arith.constant 0 : i32
    %c0_i32_2 = arith.constant 0 : i32
    return %c0_i32, %c0_i32_0, %c0_i32_1 : i32, i32, i32
  }
  func.func @transform_3(%arg0: i32) -> (i32, i32, i32) {
    %c0_i32 = arith.constant 0 : i32
    %c0_i32_0 = arith.constant 0 : i32
    %c0_i32_1 = arith.constant 0 : i32
    %c0_i32_2 = arith.constant 0 : i32
    return %c0_i32, %c0_i32_0, %c0_i32_1 : i32, i32, i32
  }
  func.func @transform_4(%arg0: i32) -> (i32, i32, i32) {
    %c0_i32 = arith.constant 0 : i32
    %c0_i32_0 = arith.constant 0 : i32
    %c0_i32_1 = arith.constant 0 : i32
    %c0_i32_2 = arith.constant 0 : i32
    return %c0_i32, %c0_i32_0, %c0_i32_1 : i32, i32, i32
  }
  func.func @transform_5(%arg0: i32) -> (i32, i32) {
    %c0_i32 = arith.constant 0 : i32
    %c0_i32_0 = arith.constant 0 : i32
    %c0_i32_1 = arith.constant 0 : i32
    return %c0_i32, %c0_i32_0 : i32, i32
  }
  func.func @transform_6(%arg0: i32) -> (i32, i32) {
    %c0_i32 = arith.constant 0 : i32
    %c0_i32_0 = arith.constant 0 : i32
    %c0_i32_1 = arith.constant 0 : i32
    return %c0_i32, %c0_i32_0 : i32, i32
  }
  func.func @transform_7(%arg0: i32) -> (i32, i32, i32) {
    %c0_i32 = arith.constant 0 : i32
    %c0_i32_0 = arith.constant 0 : i32
    %c0_i32_1 = arith.constant 0 : i32
    return %arg0, %c0_i32, %c0_i32_0 : i32, i32, i32
  }
  func.func @transform_8(%arg0: i32) -> (i32, i32) {
    %c0_i32 = arith.constant 0 : i32
    %c0_i32_0 = arith.constant 0 : i32
    %c0_i32_1 = arith.constant 0 : i32
    return %c0_i32, %c0_i32_0 : i32, i32
  }
}

</mosaic_0001>

<llo_original>
// kernel: gru_encoder_forward.1
$region0: #{gru_encoder_forward.1}
  #allocation0 [shape = 'u32[]', space=smem, size = 0x4, offset = 0x4, fixed_abs, tag = 'smem constant byte address 0x4 - core index']
  #allocation1 [shape = 'u32[72,128]{1,0:T(1,128)}', space=vmem, size = 0x9000, scoped, tag = 'internal scratch']
  #allocation2 [shape = 'f32[2,32]{1,0:T(2,128)}', space=vmem, size = 0x400, scoped, tag = 'scratch operand']
  %s0 = inlined_call_operand.vmem [shape: f32[8,2,8], index: 0, kind: input, shape index: {}]
  %s1 = inlined_call_operand.vmem [shape: f32[3,8,32], index: 1, kind: input, shape index: {}]
  %s2 = inlined_call_operand.vmem [shape: f32[3,1,32], index: 2, kind: input, shape index: {}]
  %s3 = inlined_call_operand.hbm [shape: f32[3,32,32], index: 3, kind: input, shape index: {}]
  %s4 = inlined_call_operand.vmem [shape: f32[3,1,32], index: 4, kind: input, shape index: {}]
  %s5 = inlined_call_operand.vmem [shape: f32[32,16], index: 5, kind: input, shape index: {}]
  %s6 = inlined_call_operand.vmem [shape: f32[1,16], index: 6, kind: input, shape index: {}]
  %s7 = inlined_call_operand.vmem [shape: f32[8,2,16], index: 7, kind: output, shape index: {0}]
  %s8 = inlined_call_operand.hbm [shape: f32[2,32], index: 8, kind: output, shape index: {1}]
  %9 = xla_tuple %s7, %s8
  %s10 = sld [smem:[#allocation0]]
  $region58: #{gru_encoder_forward.1} parent=0
    _
  %s12 = ssub.s32 1, %s10
  %s13 = scalar_select 0, %s12, %s10
  $region1: #{gru_encoder_forward.1} parent=0
    #allocation3 [shape = 'u8[49152]{0}', space=vmem, size = 0xc000, scoped, tag = 'input window, operand 3, single buffered']
    #allocation4 [shape = 's32[1]{0}', space=sflag, size = 0x4, scoped, tag = 'scoped memory for gru_encoder_forward.1']
    #allocation5 [shape = 's32[1]{0}', space=sflag, size = 0x4, scoped, tag = 'scoped memory for gru_encoder_forward.1']
    #allocation6 [shape = 'u8[1024]{0}', space=vmem, size = 0x400, scoped, tag = 'output window, operand 1, single buffered']
    %14 = vsyncpa [#allocation4], 0
    %15 = vsyncpa [#allocation5], 0
    // Predicated region
    $region2: #{gru_encoder_forward.1} parent=1 // pred_check
      _
    $region3: #{gru_encoder_forward.1} parent=1 // pred_check_branch
      %17 = sbr.rel (0) target = $region5
    $region4: #{gru_encoder_forward.1} parent=1 // pred_region
      _
    $region5: #{gru_encoder_forward.1} parent=1 // pred_fallthru
      _
    // Predicated region
    $region6: #{gru_encoder_forward.1} parent=1 // pred_check
      _
    $region7: #{gru_encoder_forward.1} parent=1 // pred_check_branch
      %19 = sbr.rel (0) target = $region9
    $region8: #{gru_encoder_forward.1} parent=1 // pred_region
      _
    $region9: #{gru_encoder_forward.1} parent=1 // pred_fallthru
      _
    // Predicated region
    $region10: #{gru_encoder_forward.1} parent=1 // pred_check
      _
    $region11: #{gru_encoder_forward.1} parent=1 // pred_check_branch
      %21 = sbr.rel (0) target = $region13
    $region12: #{gru_encoder_forward.1} parent=1 // pred_region
      _
    $region13: #{gru_encoder_forward.1} parent=1 // pred_fallthru
      _
    // Predicated region
    $region14: #{gru_encoder_forward.1} parent=1 // pred_check
      _
    $region15: #{gru_encoder_forward.1} parent=1 // pred_check_branch
      %23 = sbr.rel (0) target = $region17
    $region16: #{gru_encoder_forward.1} parent=1 // pred_region
      %25 = vsyncadd [#allocation4], 0
      %s26 = sshll.u32 %s3, 4
      %s27 = int_to_ptr.hbm [resolvable:$true] %s26
      %s28 = sshll.u32 [#allocation3], 4
      %s29 = int_to_ptr.vmem [resolvable:$true] %s28
      %34 = dma.hbm_to_vmem [thread:$0]  %s27, 1536, %s29, [#allocation4], 128, 128, 8
    $region17: #{gru_encoder_forward.1} parent=1 // pred_fallthru
      _
    // Predicated region
    $region18: #{gru_encoder_forward.1} parent=1 // pred_check
      _
    $region19: #{gru_encoder_forward.1} parent=1 // pred_check_branch
      %36 = sbr.rel (0) target = $region21
    $region20: #{gru_encoder_forward.1} parent=1 // pred_region
      _
    $region21: #{gru_encoder_forward.1} parent=1 // pred_fallthru
      _
    // Predicated region
    $region22: #{gru_encoder_forward.1} parent=1 // pred_check
      _
    $region23: #{gru_encoder_forward.1} parent=1 // pred_check_branch
      %38 = sbr.rel (0) target = $region25
    $region24: #{gru_encoder_forward.1} parent=1 // pred_region
      _
    $region25: #{gru_encoder_forward.1} parent=1 // pred_fallthru
      _
    // Predicated region
    $region26: #{gru_encoder_forward.1} parent=1 // pred_check
      _
    $region27: #{gru_encoder_forward.1} parent=1 // pred_check_branch
      %40 = sbr.rel (0) target = $region29
    $region28: #{gru_encoder_forward.1} parent=1 // pred_region
      _
    $region29: #{gru_encoder_forward.1} parent=1 // pred_fallthru
      _
    // Predicated region
    $region30: #{gru_encoder_forward.1} parent=1 // pred_check
      _
    $region31: #{gru_encoder_forward.1} parent=1 // pred_check_branch
      %42 = sbr.rel (0) target = $region33
    $region32: #{gru_encoder_forward.1} parent=1 // pred_region
      %44 = dma.done [#allocation4], 1536
    $region33: #{gru_encoder_forward.1} parent=1 // pred_fallthru
      _
    %p45 = scmp.eq.s32.totalorder 0, 0
    // Predicated region
    $region34: #{gru_encoder_forward.1} parent=1 // pred_check
      %p46 = pneg %p45
    $region35: #{gru_encoder_forward.1} parent=1 // pred_check_branch
      %48 = sbr.rel (%p46) target = $region37
    $region36: #{gru_encoder_forward.1} parent=1 // pred_region
      %vm49 = vcmask 254976
      %50 = vst.msk [vmem:[#allocation2] sm:$0x3] %vm49, 0.0
    $region37: #{gru_encoder_forward.1} parent=1 // pred_fallthru
      _
    %v51 = vld [vmem:[%s1] sm:$0xff]
    %s52 = scalar_lea.vmem %s1, 8
    %v53 = vld [vmem:[%s52] sm:$0xff]
    %s54 = scalar_lea.vmem %s1, 16
    %v55 = vld [vmem:[%s54] sm:$0xff]
    %v56 = vld [vmem:[#allocation3] sm:$0xff]
    %v57 = vld [vmem:[#allocation3 + $0x8] sm:$0xff]
    %v58 = vld [vmem:[#allocation3 + $0x10] sm:$0xff]
    %v59 = vld [vmem:[#allocation3 + $0x18] sm:$0xff]
    %s60 = scalar_lea.vmem [#allocation3], 32
    %v61 = vld [vmem:[%s60] sm:$0xff]
    %v62 = vld [vmem:[%s60 + $0x8] sm:$0xff]
    %v63 = vld [vmem:[%s60 + $0x10] sm:$0xff]
    %v64 = vld [vmem:[%s60 + $0x18] sm:$0xff]
    %s65 = scalar_lea.vmem [#allocation3], 64
    %v66 = vld [vmem:[%s65] sm:$0xff]
    %v67 = vld [vmem:[%s65 + $0x8] sm:$0xff]
    %v68 = vld [vmem:[%s65 + $0x10] sm:$0xff]
    %v69 = vld [vmem:[%s65 + $0x18] sm:$0xff]
    %v70 = vld [vmem:[%s2] sm:$0x1]
    %v71 = vld [vmem:[%s4] sm:$0x1]
    %v72 = vadd.f32 %v70, %v71
    %s73 = scalar_lea.vmem %s2, 1
    %v74 = vld [vmem:[%s73] sm:$0x1]
    %s75 = scalar_lea.vmem %s4, 1
    %v76 = vld [vmem:[%s75] sm:$0x1]
    %v77 = vadd.f32 %v74, %v76
    %s78 = scalar_lea.vmem %s2, 2
    %v79 = vld [vmem:[%s78] sm:$0x1]
    %s80 = scalar_lea.vmem %s4, 2
    %v81 = vld [vmem:[%s80] sm:$0x1]
    %v82 = vld [vmem:[%s5] sm:$0xff]
    %v83 = vld [vmem:[%s5 + $0x8] sm:$0xff]
    %v84 = vld [vmem:[%s5 + $0x10] sm:$0xff]
    %v85 = vld [vmem:[%s5 + $0x18] sm:$0xff]
    %v86 = vld [vmem:[%s6] sm:$0x1]
    %v87 = vld [vmem:[#allocation2] sm:$0x3]
    %v88 = vld [vmem:[%s0] sm:$0x3]
    %vm89 = vcmask 261120
    %v91 = vsel %vm89, %v87, 0
    %93 = vmatpush.msra.mxu0 0.0
    %94 = vmatpush.msra.mxu0 0.0
    %95 = vmatpush.msra.mxu0 0.0
    %96 = vmatpush.msra.mxu0 0.0
    %97 = vmatpush.msra.mxu0 0.0
    %98 = vmatpush.msra.mxu0 0.0
    %99 = vmatpush.msra.mxu0 0.0
    %100 = vmatpush.msra.mxu0 0.0
    %101 = vmatpush.msra.mxu0 0.0
    %102 = vmatpush.msra.mxu0 0.0
    %103 = vmatpush.msra.mxu0 0.0
    %104 = vmatpush.msra.mxu0 0.0
    %105 = vmatpush.msra.mxu0 %v59
    %106 = vmatpush.msra.mxu0 %v58
    %107 = vmatpush.msra.mxu0 %v57
    %108 = vmatpush.msra.mxu0 %v56
    %109 = vmatmul.f32.gmra.mxu0 %v91
    %v110 = vpop.f32.mrf.mxu0
    %v111 = vadd.f32 0.0, %v110
    %112 = vdwg.mxu0
    %113 = vmatpush.msra.mxu0 0.0
    %114 = vmatpush.msra.mxu0 0.0
    %115 = vmatpush.msra.mxu0 0.0
    %116 = vmatpush.msra.mxu0 0.0
    %117 = vmatpush.msra.mxu0 0.0
    %118 = vmatpush.msra.mxu0 0.0
    %119 = vmatpush.msra.mxu0 0.0
    %120 = vmatpush.msra.mxu0 0.0
    %121 = vmatpush.msra.mxu0 0.0
    %122 = vmatpush.msra.mxu0 0.0
    %123 = vmatpush.msra.mxu0 0.0
    %124 = vmatpush.msra.mxu0 0.0
    %125 = vmatpush.msra.mxu0 %v64
    %126 = vmatpush.msra.mxu0 %v63
    %127 = vmatpush.msra.mxu0 %v62
    %128 = vmatpush.msra.mxu0 %v61
    %129 = vmatmul.f32.gmra.mxu0 %v91
    %v130 = vpop.f32.mrf.mxu0
    %v131 = vadd.f32 0.0, %v130
    %132 = vdwg.mxu0
    %v134 = vperm.slane %v81, 0
    %136 = vmatpush.msra.mxu0 0.0
    %137 = vmatpush.msra.mxu0 0.0
    %138 = vmatpush.msra.mxu0 0.0
    %139 = vmatpush.msra.mxu0 0.0
    %140 = vmatpush.msra.mxu0 0.0
    %141 = vmatpush.msra.mxu0 0.0
    %142 = vmatpush.msra.mxu0 0.0
    %143 = vmatpush.msra.mxu0 0.0
    %144 = vmatpush.msra.mxu0 0.0
    %145 = vmatpush.msra.mxu0 0.0
    %146 = vmatpush.msra.mxu0 0.0
    %147 = vmatpush.msra.mxu0 0.0
    %148 = vmatpush.msra.mxu0 %v69
    %149 = vmatpush.msra.mxu0 %v68
    %150 = vmatpush.msra.mxu0 %v67
    %151 = vmatpush.msra.mxu0 %v66
    %152 = vmatmul.f32.gmra.mxu0 %v91
    %v153 = vpop.f32.mrf.mxu0
    %v154 = vadd.f32 %v134, %v153
    %155 = vdwg.mxu0
    %v157 = vperm.slane %v79, 0
    %vm159 = vcmask 64512
    %v161 = vsel %vm159, %v88, 0
    %163 = vmatpush.msra.mxu0 0.0
    %164 = vmatpush.msra.mxu0 0.0
    %165 = vmatpush.msra.mxu0 0.0
    %166 = vmatpush.msra.mxu0 0.0
    %167 = vmatpush.msra.mxu0 0.0
    %168 = vmatpush.msra.mxu0 0.0
    %169 = vmatpush.msra.mxu0 0.0
    %170 = vmatpush.msra.mxu0 0.0
    %171 = vmatpush.msra.mxu0 0.0
    %172 = vmatpush.msra.mxu0 0.0
    %173 = vmatpush.msra.mxu0 0.0
    %174 = vmatpush.msra.mxu0 0.0
    %175 = vmatpush.msra.mxu0 0.0
    %176 = vmatpush.msra.mxu0 0.0
    %177 = vmatpush.msra.mxu0 0.0
    %178 = vmatpush.msra.mxu0 %v55
    %179 = vmatmul.f32.gmra.mxu0 %v161
    %v180 = vpop.f32.mrf.mxu0
    %v181 = vadd.f32 %v157, %v180
    %182 = vdwg.mxu0
    %183 = vmatpush.msra.mxu0 0.0
    %184 = vmatpush.msra.mxu0 0.0
    %185 = vmatpush.msra.mxu0 0.0
    %186 = vmatpush.msra.mxu0 0.0
    %187 = vmatpush.msra.mxu0 0.0
    %188 = vmatpush.msra.mxu0 0.0
    %189 = vmatpush.msra.mxu0 0.0
    %190 = vmatpush.msra.mxu0 0.0
    %191 = vmatpush.msra.mxu0 0.0
    %192 = vmatpush.msra.mxu0 0.0
    %193 = vmatpush.msra.mxu0 0.0
    %194 = vmatpush.msra.mxu0 0.0
    %195 = vmatpush.msra.mxu0 0.0
    %196 = vmatpush.msra.mxu0 0.0
    %197 = vmatpush.msra.mxu0 0.0
    %198 = vmatpush.msra.mxu0 %v51
    %199 = vmatmul.f32.gmra.mxu0 %v161
    %v200 = vpop.f32.mrf.mxu0
    %v201 = vadd.f32 %v111, %v200
    %202 = vdwg.mxu0
    %v204 = vperm.slane %v72, 0
    %v206 = vadd.f32 %v201, %v204
    %v207 = vxor.u32 %v206, 2147483648
    %v208 = vmul.f32 %v207, 1.442695
    %v209 = vpow.pop %v208
    %v210 = vadd.f32 %v209, 1.0
    %v211 = vrcp.pop %v210
    %v212 = vmul.f32 %v210, %v211
    %v213 = vsub.f32 1.0, %v212
    %v214 = vmul.f32 %v211, %v213
    %v215 = vadd.f32 %v211, %v214
    %vm216 = vweird.f32 %v210
    %vm217 = vweird.f32 %v211
    %vm218 = vmor %vm216, %vm217
    %v219 = vsel %vm218, %v211, %v215
    %v220 = vand.u32 2147483647, %v210
    %vm221 = vcmp.eq.f32.partialorder %v220, 8.507059e+37
    %v222 = vand.u32 %v210, 2147483648
    %v223 = vor.u32 1.1754944e-38, %v222
    %v224 = vsel %vm221, %v223, %v219
    %v225 = vmul.f32 1.0, %v224
    %226 = vmatpush.msra.mxu0 0.0
    %227 = vmatpush.msra.mxu0 0.0
    %228 = vmatpush.msra.mxu0 0.0
    %229 = vmatpush.msra.mxu0 0.0
    %230 = vmatpush.msra.mxu0 0.0
    %231 = vmatpush.msra.mxu0 0.0
    %232 = vmatpush.msra.mxu0 0.0
    %233 = vmatpush.msra.mxu0 0.0
    %234 = vmatpush.msra.mxu0 0.0
    %235 = vmatpush.msra.mxu0 0.0
    %236 = vmatpush.msra.mxu0 0.0
    %237 = vmatpush.msra.mxu0 0.0
    %238 = vmatpush.msra.mxu0 0.0
    %239 = vmatpush.msra.mxu0 0.0
    %240 = vmatpush.msra.mxu0 0.0
    %241 = vmatpush.msra.mxu0 %v53
    %242 = vmatmul.f32.gmra.mxu0 %v161
    %v243 = vpop.f32.mrf.mxu0
    %v244 = vadd.f32 %v131, %v243
    %245 = vdwg.mxu0
    %v247 = vperm.slane %v77, 0
    %v249 = vadd.f32 %v244, %v247
    %v250 = vxor.u32 %v249, 2147483648
    %v251 = vmul.f32 %v250, 1.442695
    %v252 = vpow.pop %v251
    %v253 = vadd.f32 %v252, 1.0
    %v254 = vrcp.pop %v253
    %v255 = vmul.f32 %v253, %v254
    %v256 = vsub.f32 1.0, %v255
    %v257 = vmul.f32 %v254, %v256
    %v258 = vadd.f32 %v254, %v257
    %vm259 = vweird.f32 %v253
    %vm260 = vweird.f32 %v254
    %vm261 = vmor %vm259, %vm260
    %v262 = vsel %vm261, %v254, %v258
    %v263 = vand.u32 2147483647, %v253
    %vm264 = vcmp.eq.f32.partialorder %v263, 8.507059e+37
    %v265 = vand.u32 %v253, 2147483648
    %v266 = vor.u32 1.1754944e-38, %v265
    %v267 = vsel %vm264, %v266, %v262
    %v268 = vmul.f32 1.0, %v267
    %v269 = vmul.f32 %v225, %v154
    %v270 = vadd.f32 %v181, %v269
    %v271 = vtanh.pop %v270
    %v272 = vsub.f32 1.0, %v268
    %v273 = vmul.f32 %v272, %v271
    %v274 = vmul.f32 %v268, %v87
    %v275 = vadd.f32 %v273, %v274
    %v277 = vperm.slane %v86, 0
    %v280 = vsel %vm89, %v275, 0
    %282 = vmatpush.msra.mxu0 0.0
    %283 = vmatpush.msra.mxu0 0.0
    %284 = vmatpush.msra.mxu0 0.0
    %285 = vmatpush.msra.mxu0 0.0
    %286 = vmatpush.msra.mxu0 0.0
    %287 = vmatpush.msra.mxu0 0.0
    %288 = vmatpush.msra.mxu0 0.0
    %289 = vmatpush.msra.mxu0 0.0
    %290 = vmatpush.msra.mxu0 0.0
    %291 = vmatpush.msra.mxu0 0.0
    %292 = vmatpush.msra.mxu0 0.0
    %293 = vmatpush.msra.mxu0 0.0
    %294 = vmatpush.msra.mxu0 %v85
    %295 = vmatpush.msra.mxu0 %v84
    %296 = vmatpush.msra.mxu0 %v83
    %297 = vmatpush.msra.mxu0 %v82
    %298 = vmatmul.f32.gmra.mxu0 %v280
    %v299 = vpop.f32.mrf.mxu0
    %v300 = vadd.f32 %v277, %v299
    %301 = vdwg.mxu0
    %vm302 = vcmask 123904
    %303 = vst.msk [vmem:[%s7] sm:$0x3] %vm302, %v300
    %s304 = scalar_lea.vmem %s0, 2
    %v305 = vld [vmem:[%s304] sm:$0x3]
    %306 = vmatpush.msra.mxu0 0.0
    %307 = vmatpush.msra.mxu0 0.0
    %308 = vmatpush.msra.mxu0 0.0
    %309 = vmatpush.msra.mxu0 0.0
    %310 = vmatpush.msra.mxu0 0.0
    %311 = vmatpush.msra.mxu0 0.0
    %312 = vmatpush.msra.mxu0 0.0
    %313 = vmatpush.msra.mxu0 0.0
    %314 = vmatpush.msra.mxu0 0.0
    %315 = vmatpush.msra.mxu0 0.0
    %316 = vmatpush.msra.mxu0 0.0
    %317 = vmatpush.msra.mxu0 0.0
    %318 = vmatpush.msra.mxu0 %v59
    %319 = vmatpush.msra.mxu0 %v58
    %320 = vmatpush.msra.mxu0 %v57
    %321 = vmatpush.msra.mxu0 %v56
    %322 = vmatmul.f32.gmra.mxu0 %v280
    %v323 = vpop.f32.mrf.mxu0
    %v324 = vadd.f32 0.0, %v323
    %325 = vdwg.mxu0
    %326 = vmatpush.msra.mxu0 0.0
    %327 = vmatpush.msra.mxu0 0.0
    %328 = vmatpush.msra.mxu0 0.0
    %329 = vmatpush.msra.mxu0 0.0
    %330 = vmatpush.msra.mxu0 0.0
    %331 = vmatpush.msra.mxu0 0.0
    %332 = vmatpush.msra.mxu0 0.0
    %333 = vmatpush.msra.mxu0 0.0
    %334 = vmatpush.msra.mxu0 0.0
    %335 = vmatpush.msra.mxu0 0.0
    %336 = vmatpush.msra.mxu0 0.0
    %337 = vmatpush.msra.mxu0 0.0
    %338 = vmatpush.msra.mxu0 %v64
    %339 = vmatpush.msra.mxu0 %v63
    %340 = vmatpush.msra.mxu0 %v62
    %341 = vmatpush.msra.mxu0 %v61
    %342 = vmatmul.f32.gmra.mxu0 %v280
    %v343 = vpop.f32.mrf.mxu0
    %v344 = vadd.f32 0.0, %v343
    %345 = vdwg.mxu0
    %346 = vmatpush.msra.mxu0 0.0
    %347 = vmatpush.msra.mxu0 0.0
    %348 = vmatpush.msra.mxu0 0.0
    %349 = vmatpush.msra.mxu0 0.0
    %350 = vmatpush.msra.mxu0 0.0
    %351 = vmatpush.msra.mxu0 0.0
    %352 = vmatpush.msra.mxu0 0.0
    %353 = vmatpush.msra.mxu0 0.0
    %354 = vmatpush.msra.mxu0 0.0
    %355 = vmatpush.msra.mxu0 0.0
    %356 = vmatpush.msra.mxu0 0.0
    %357 = vmatpush.msra.mxu0 0.0
    %358 = vmatpush.msra.mxu0 %v69
    %359 = vmatpush.msra.mxu0 %v68
    %360 = vmatpush.msra.mxu0 %v67
    %361 = vmatpush.msra.mxu0 %v66
    %362 = vmatmul.f32.gmra.mxu0 %v280
    %v363 = vpop.f32.mrf.mxu0
    %v364 = vadd.f32 %v134, %v363
    %365 = vdwg.mxu0
    %v367 = vsel %vm159, %v305, 0
    %369 = vmatpush.msra.mxu0 0.0
    %370 = vmatpush.msra.mxu0 0.0
    %371 = vmatpush.msra.mxu0 0.0
    %372 = vmatpush.msra.mxu0 0.0
    %373 = vmatpush.msra.mxu0 0.0
    %374 = vmatpush.msra.mxu0 0.0
    %375 = vmatpush.msra.mxu0 0.0
    %376 = vmatpush.msra.mxu0 0.0
    %377 = vmatpush.msra.mxu0 0.0
    %378 = vmatpush.msra.mxu0 0.0
    %379 = vmatpush.msra.mxu0 0.0
    %380 = vmatpush.msra.mxu0 0.0
    %381 = vmatpush.msra.mxu0 0.0
    %382 = vmatpush.msra.mxu0 0.0
    %383 = vmatpush.msra.mxu0 0.0
    %384 = vmatpush.msra.mxu0 %v55
    %385 = vmatmul.f32.gmra.mxu0 %v367
    %v386 = vpop.f32.mrf.mxu0
    %v387 = vadd.f32 %v157, %v386
    %388 = vdwg.mxu0
    %389 = vmatpush.msra.mxu0 0.0
    %390 = vmatpush.msra.mxu0 0.0
    %391 = vmatpush.msra.mxu0 0.0
    %392 = vmatpush.msra.mxu0 0.0
    %393 = vmatpush.msra.mxu0 0.0
    %394 = vmatpush.msra.mxu0 0.0
    %395 = vmatpush.msra.mxu0 0.0
    %396 = vmatpush.msra.mxu0 0.0
    %397 = vmatpush.msra.mxu0 0.0
    %398 = vmatpush.msra.mxu0 0.0
    %399 = vmatpush.msra.mxu0 0.0
    %400 = vmatpush.msra.mxu0 0.0
    %401 = vmatpush.msra.mxu0 0.0
    %402 = vmatpush.msra.mxu0 0.0
    %403 = vmatpush.msra.mxu0 0.0
    %404 = vmatpush.msra.mxu0 %v51
    %405 = vmatmul.f32.gmra.mxu0 %v367
    %v406 = vpop.f32.mrf.mxu0
    %v407 = vadd.f32 %v324, %v406
    %408 = vdwg.mxu0
    %v409 = vadd.f32 %v407, %v204
    %v410 = vxor.u32 %v409, 2147483648
    %v411 = vmul.f32 %v410, 1.442695
    %v412 = vpow.pop %v411
    %v413 = vadd.f32 %v412, 1.0
    %v414 = vrcp.pop %v413
    %v415 = vmul.f32 %v413, %v414
    %v416 = vsub.f32 1.0, %v415
    %v417 = vmul.f32 %v414, %v416
    %v418 = vadd.f32 %v414, %v417
    %vm419 = vweird.f32 %v413
    %vm420 = vweird.f32 %v414
    %vm421 = vmor %vm419, %vm420
    %v422 = vsel %vm421, %v414, %v418
    %v423 = vand.u32 2147483647, %v413
    %vm424 = vcmp.eq.f32.partialorder %v423, 8.507059e+37
    %v425 = vand.u32 %v413, 2147483648
    %v426 = vor.u32 1.1754944e-38, %v425
    %v427 = vsel %vm424, %v426, %v422
    %v428 = vmul.f32 1.0, %v427
    %429 = vmatpush.msra.mxu0 0.0
    %430 = vmatpush.msra.mxu0 0.0
    %431 = vmatpush.msra.mxu0 0.0
    %432 = vmatpush.msra.mxu0 0.0
    %433 = vmatpush.msra.mxu0 0.0
    %434 = vmatpush.msra.mxu0 0.0
    %435 = vmatpush.msra.mxu0 0.0
    %436 = vmatpush.msra.mxu0 0.0
    %437 = vmatpush.msra.mxu0 0.0
    %438 = vmatpush.msra.mxu0 0.0
    %439 = vmatpush.msra.mxu0 0.0
    %440 = vmatpush.msra.mxu0 0.0
    %441 = vmatpush.msra.mxu0 0.0
    %442 = vmatpush.msra.mxu0 0.0
    %443 = vmatpush.msra.mxu0 0.0
    %444 = vmatpush.msra.mxu0 %v53
    %445 = vmatmul.f32.gmra.mxu0 %v367
    %v446 = vpop.f32.mrf.mxu0
    %v447 = vadd.f32 %v344, %v446
    %448 = vdwg.mxu0
    %v449 = vadd.f32 %v447, %v247
    %v450 = vxor.u32 %v449, 2147483648
    %v451 = vmul.f32 %v450, 1.442695
    %v452 = vpow.pop %v451
    %v453 = vadd.f32 %v452, 1.0
    %v454 = vrcp.pop %v453
    %v455 = vmul.f32 %v453, %v454
    %v456 = vsub.f32 1.0, %v455
    %v457 = vmul.f32 %v454, %v456
    %v458 = vadd.f32 %v454, %v457
    %vm459 = vweird.f32 %v453
    %vm460 = vweird.f32 %v454
    %vm461 = vmor %vm459, %vm460
    %v462 = vsel %vm461, %v454, %v458
    %v463 = vand.u32 2147483647, %v453
    %vm464 = vcmp.eq.f32.partialorder %v463, 8.507059e+37
    %v465 = vand.u32 %v453, 2147483648
    %v466 = vor.u32 1.1754944e-38, %v465
    %v467 = vsel %vm464, %v466, %v462
    %v468 = vmul.f32 1.0, %v467
    %v469 = vmul.f32 %v428, %v364
    %v470 = vadd.f32 %v387, %v469
    %v471 = vtanh.pop %v470
    %v472 = vsub.f32 1.0, %v468
    %v473 = vmul.f32 %v472, %v471
    %v474 = vmul.f32 %v468, %v275
    %v475 = vadd.f32 %v473, %v474
    %v477 = vsel %vm89, %v475, 0
    %479 = vmatpush.msra.mxu0 0.0
    %480 = vmatpush.msra.mxu0 0.0
    %481 = vmatpush.msra.mxu0 0.0
    %482 = vmatpush.msra.mxu0 0.0
    %483 = vmatpush.msra.mxu0 0.0
    %484 = vmatpush.msra.mxu0 0.0
    %485 = vmatpush.msra.mxu0 0.0
    %486 = vmatpush.msra.mxu0 0.0
    %487 = vmatpush.msra.mxu0 0.0
    %488 = vmatpush.msra.mxu0 0.0
    %489 = vmatpush.msra.mxu0 0.0
    %490 = vmatpush.msra.mxu0 0.0
    %491 = vmatpush.msra.mxu0 %v85
    %492 = vmatpush.msra.mxu0 %v84
    %493 = vmatpush.msra.mxu0 %v83
    %494 = vmatpush.msra.mxu0 %v82
    %495 = vmatmul.f32.gmra.mxu0 %v477
    %v496 = vpop.f32.mrf.mxu0
    %v497 = vadd.f32 %v277, %v496
    %498 = vdwg.mxu0
    %s499 = scalar_lea.vmem %s7, 2
    %500 = vst.msk [vmem:[%s499] sm:$0x3] %vm302, %v497
    %s501 = scalar_lea.vmem %s0, 4
    %v502 = vld [vmem:[%s501] sm:$0x3]
    %503 = vmatpush.msra.mxu0 0.0
    %504 = vmatpush.msra.mxu0 0.0
    %505 = vmatpush.msra.mxu0 0.0
    %506 = vmatpush.msra.mxu0 0.0
    %507 = vmatpush.msra.mxu0 0.0
    %508 = vmatpush.msra.mxu0 0.0
    %509 = vmatpush.msra.mxu0 0.0
    %510 = vmatpush.msra.mxu0 0.0
    %511 = vmatpush.msra.mxu0 0.0
    %512 = vmatpush.msra.mxu0 0.0
    %513 = vmatpush.msra.mxu0 0.0
    %514 = vmatpush.msra.mxu0 0.0
    %515 = vmatpush.msra.mxu0 %v59
    %516 = vmatpush.msra.mxu0 %v58
    %517 = vmatpush.msra.mxu0 %v57
    %518 = vmatpush.msra.mxu0 %v56
    %519 = vmatmul.f32.gmra.mxu0 %v477
    %v520 = vpop.f32.mrf.mxu0
    %v521 = vadd.f32 0.0, %v520
    %522 = vdwg.mxu0
    %523 = vmatpush.msra.mxu0 0.0
    %524 = vmatpush.msra.mxu0 0.0
    %525 = vmatpush.msra.mxu0 0.0
    %526 = vmatpush.msra.mxu0 0.0
    %527 = vmatpush.msra.mxu0 0.0
    %528 = vmatpush.msra.mxu0 0.0
    %529 = vmatpush.msra.mxu0 0.0
    %530 = vmatpush.msra.mxu0 0.0
    %531 = vmatpush.msra.mxu0 0.0
    %532 = vmatpush.msra.mxu0 0.0
    %533 = vmatpush.msra.mxu0 0.0
    %534 = vmatpush.msra.mxu0 0.0
    %535 = vmatpush.msra.mxu0 %v64
    %536 = vmatpush.msra.mxu0 %v63
    %537 = vmatpush.msra.mxu0 %v62
    %538 = vmatpush.msra.mxu0 %v61
    %539 = vmatmul.f32.gmra.mxu0 %v477
    %v540 = vpop.f32.mrf.mxu0
    %v541 = vadd.f32 0.0, %v540
    %542 = vdwg.mxu0
    %543 = vmatpush.msra.mxu0 0.0
    %544 = vmatpush.msra.mxu0 0.0
    %545 = vmatpush.msra.mxu0 0.0
    %546 = vmatpush.msra.mxu0 0.0
    %547 = vmatpush.msra.mxu0 0.0
    %548 = vmatpush.msra.mxu0 0.0
    %549 = vmatpush.msra.mxu0 0.0
    %550 = vmatpush.msra.mxu0 0.0
    %551 = vmatpush.msra.mxu0 0.0
    %552 = vmatpush.msra.mxu0 0.0
    %553 = vmatpush.msra.mxu0 0.0
    %554 = vmatpush.msra.mxu0 0.0
    %555 = vmatpush.msra.mxu0 %v69
    %556 = vmatpush.msra.mxu0 %v68
    %557 = vmatpush.msra.mxu0 %v67
    %558 = vmatpush.msra.mxu0 %v66
    %559 = vmatmul.f32.gmra.mxu0 %v477
    %v560 = vpop.f32.mrf.mxu0
    %v561 = vadd.f32 %v134, %v560
    %562 = vdwg.mxu0
    %v564 = vsel %vm159, %v502, 0
    %566 = vmatpush.msra.mxu0 0.0
    %567 = vmatpush.msra.mxu0 0.0
    %568 = vmatpush.msra.mxu0 0.0
    %569 = vmatpush.msra.mxu0 0.0
    %570 = vmatpush.msra.mxu0 0.0
    %571 = vmatpush.msra.mxu0 0.0
    %572 = vmatpush.msra.mxu0 0.0
    %573 = vmatpush.msra.mxu0 0.0
    %574 = vmatpush.msra.mxu0 0.0
    %575 = vmatpush.msra.mxu0 0.0
    %576 = vmatpush.msra.mxu0 0.0
    %577 = vmatpush.msra.mxu0 0.0
    %578 = vmatpush.msra.mxu0 0.0
    %579 = vmatpush.msra.mxu0 0.0
    %580 = vmatpush.msra.mxu0 0.0
    %581 = vmatpush.msra.mxu0 %v55
    %582 = vmatmul.f32.gmra.mxu0 %v564
    %v583 = vpop.f32.mrf.mxu0
    %v584 = vadd.f32 %v157, %v583
    %585 = vdwg.mxu0
    %586 = vmatpush.msra.mxu0 0.0
    %587 = vmatpush.msra.mxu0 0.0
    %588 = vmatpush.msra.mxu0 0.0
    %589 = vmatpush.msra.mxu0 0.0
    %590 = vmatpush.msra.mxu0 0.0
    %591 = vmatpush.msra.mxu0 0.0
    %592 = vmatpush.msra.mxu0 0.0
    %593 = vmatpush.msra.mxu0 0.0
    %594 = vmatpush.msra.mxu0 0.0
    %595 = vmatpush.msra.mxu0 0.0
    %596 = vmatpush.msra.mxu0 0.0
    %597 = vmatpush.msra.mxu0 0.0
    %598 = vmatpush.msra.mxu0 0.0
    %599 = vmatpush.msra.mxu0 0.0
    %600 = vmatpush.msra.mxu0 0.0
    %601 = vmatpush.msra.mxu0 %v51
    %602 = vmatmul.f32.gmra.mxu0 %v564
    %v603 = vpop.f32.mrf.mxu0
    %v604 = vadd.f32 %v521, %v603
    %605 = vdwg.mxu0
    %v606 = vadd.f32 %v604, %v204
    %v607 = vxor.u32 %v606, 2147483648
    %v608 = vmul.f32 %v607, 1.442695
    %v609 = vpow.pop %v608
    %v610 = vadd.f32 %v609, 1.0
    %v611 = vrcp.pop %v610
    %v612 = vmul.f32 %v610, %v611
    %v613 = vsub.f32 1.0, %v612
    %v614 = vmul.f32 %v611, %v613
    %v615 = vadd.f32 %v611, %v614
    %vm616 = vweird.f32 %v610
    %vm617 = vweird.f32 %v611
    %vm618 = vmor %vm616, %vm617
    %v619 = vsel %vm618, %v611, %v615
    %v620 = vand.u32 2147483647, %v610
    %vm621 = vcmp.eq.f32.partialorder %v620, 8.507059e+37
    %v622 = vand.u32 %v610, 2147483648
    %v623 = vor.u32 1.1754944e-38, %v622
    %v624 = vsel %vm621, %v623, %v619
    %v625 = vmul.f32 1.0, %v624
    %626 = vmatpush.msra.mxu0 0.0
    %627 = vmatpush.msra.mxu0 0.0
    %628 = vmatpush.msra.mxu0 0.0
    %629 = vmatpush.msra.mxu0 0.0
    %630 = vmatpush.msra.mxu0 0.0
    %631 = vmatpush.msra.mxu0 0.0
    %632 = vmatpush.msra.mxu0 0.0
    %633 = vmatpush.msra.mxu0 0.0
    %634 = vmatpush.msra.mxu0 0.0
    %635 = vmatpush.msra.mxu0 0.0
    %636 = vmatpush.msra.mxu0 0.0
    %637 = vmatpush.msra.mxu0 0.0
    %638 = vmatpush.msra.mxu0 0.0
    %639 = vmatpush.msra.mxu0 0.0
    %640 = vmatpush.msra.mxu0 0.0
    %641 = vmatpush.msra.mxu0 %v53
    %642 = vmatmul.f32.gmra.mxu0 %v564
    %v643 = vpop.f32.mrf.mxu0
    %v644 = vadd.f32 %v541, %v643
    %645 = vdwg.mxu0
    %v646 = vadd.f32 %v644, %v247
    %v647 = vxor.u32 %v646, 2147483648
    %v648 = vmul.f32 %v647, 1.442695
    %v649 = vpow.pop %v648
    %v650 = vadd.f32 %v649, 1.0
    %v651 = vrcp.pop %v650
    %v652 = vmul.f32 %v650, %v651
    %v653 = vsub.f32 1.0, %v652
    %v654 = vmul.f32 %v651, %v653
    %v655 = vadd.f32 %v651, %v654
    %vm656 = vweird.f32 %v650
    %vm657 = vweird.f32 %v651
    %vm658 = vmor %vm656, %vm657
    %v659 = vsel %vm658, %v651, %v655
    %v660 = vand.u32 2147483647, %v650
    %vm661 = vcmp.eq.f32.partialorder %v660, 8.507059e+37
    %v662 = vand.u32 %v650, 2147483648
    %v663 = vor.u32 1.1754944e-38, %v662
    %v664 = vsel %vm661, %v663, %v659
    %v665 = vmul.f32 1.0, %v664
    %v666 = vmul.f32 %v625, %v561
    %v667 = vadd.f32 %v584, %v666
    %v668 = vtanh.pop %v667
    %v669 = vsub.f32 1.0, %v665
    %v670 = vmul.f32 %v669, %v668
    %v671 = vmul.f32 %v665, %v475
    %v672 = vadd.f32 %v670, %v671
    %v674 = vsel %vm89, %v672, 0
    %676 = vmatpush.msra.mxu0 0.0
    %677 = vmatpush.msra.mxu0 0.0
    %678 = vmatpush.msra.mxu0 0.0
    %679 = vmatpush.msra.mxu0 0.0
    %680 = vmatpush.msra.mxu0 0.0
    %681 = vmatpush.msra.mxu0 0.0
    %682 = vmatpush.msra.mxu0 0.0
    %683 = vmatpush.msra.mxu0 0.0
    %684 = vmatpush.msra.mxu0 0.0
    %685 = vmatpush.msra.mxu0 0.0
    %686 = vmatpush.msra.mxu0 0.0
    %687 = vmatpush.msra.mxu0 0.0
    %688 = vmatpush.msra.mxu0 %v85
    %689 = vmatpush.msra.mxu0 %v84
    %690 = vmatpush.msra.mxu0 %v83
    %691 = vmatpush.msra.mxu0 %v82
    %692 = vmatmul.f32.gmra.mxu0 %v674
    %v693 = vpop.f32.mrf.mxu0
    %v694 = vadd.f32 %v277, %v693
    %695 = vdwg.mxu0
    %s696 = scalar_lea.vmem %s7, 4
    %697 = vst.msk [vmem:[%s696] sm:$0x3] %vm302, %v694
    %s698 = scalar_lea.vmem %s0, 6
    %v699 = vld [vmem:[%s698] sm:$0x3]
    %700 = vmatpush.msra.mxu0 0.0
    %701 = vmatpush.msra.mxu0 0.0
    %702 = vmatpush.msra.mxu0 0.0
    %703 = vmatpush.msra.mxu0 0.0
    %704 = vmatpush.msra.mxu0 0.0
    %705 = vmatpush.msra.mxu0 0.0
    %706 = vmatpush.msra.mxu0 0.0
    %707 = vmatpush.msra.mxu0 0.0
    %708 = vmatpush.msra.mxu0 0.0
    %709 = vmatpush.msra.mxu0 0.0
    %710 = vmatpush.msra.mxu0 0.0
    %711 = vmatpush.msra.mxu0 0.0
    %712 = vmatpush.msra.mxu0 %v59
    %713 = vmatpush.msra.mxu0 %v58
    %714 = vmatpush.msra.mxu0 %v57
    %715 = vmatpush.msra.mxu0 %v56
    %716 = vmatmul.f32.gmra.mxu0 %v674
    %v717 = vpop.f32.mrf.mxu0
    %v718 = vadd.f32 0.0, %v717
    %719 = vdwg.mxu0
    %720 = vmatpush.msra.mxu0 0.0
    %721 = vmatpush.msra.mxu0 0.0
    %722 = vmatpush.msra.mxu0 0.0
    %723 = vmatpush.msra.mxu0 0.0
    %724 = vmatpush.msra.mxu0 0.0
    %725 = vmatpush.msra.mxu0 0.0
    %726 = vmatpush.msra.mxu0 0.0
    %727 = vmatpush.msra.mxu0 0.0
    %728 = vmatpush.msra.mxu0 0.0
    %729 = vmatpush.msra.mxu0 0.0
    %730 = vmatpush.msra.mxu0 0.0
    %731 = vmatpush.msra.mxu0 0.0
    %732 = vmatpush.msra.mxu0 %v64
    %733 = vmatpush.msra.mxu0 %v63
    %734 = vmatpush.msra.mxu0 %v62
    %735 = vmatpush.msra.mxu0 %v61
    %736 = vmatmul.f32.gmra.mxu0 %v674
    %v737 = vpop.f32.mrf.mxu0
    %v738 = vadd.f32 0.0, %v737
    %739 = vdwg.mxu0
    %740 = vmatpush.msra.mxu0 0.0
    %741 = vmatpush.msra.mxu0 0.0
    %742 = vmatpush.msra.mxu0 0.0
    %743 = vmatpush.msra.mxu0 0.0
    %744 = vmatpush.msra.mxu0 0.0
    %745 = vmatpush.msra.mxu0 0.0
    %746 = vmatpush.msra.mxu0 0.0
    %747 = vmatpush.msra.mxu0 0.0
    %748 = vmatpush.msra.mxu0 0.0
    %749 = vmatpush.msra.mxu0 0.0
    %750 = vmatpush.msra.mxu0 0.0
    %751 = vmatpush.msra.mxu0 0.0
    %752 = vmatpush.msra.mxu0 %v69
    %753 = vmatpush.msra.mxu0 %v68
    %754 = vmatpush.msra.mxu0 %v67
    %755 = vmatpush.msra.mxu0 %v66
    %756 = vmatmul.f32.gmra.mxu0 %v674
    %v757 = vpop.f32.mrf.mxu0
    %v758 = vadd.f32 %v134, %v757
    %759 = vdwg.mxu0
    %v761 = vsel %vm159, %v699, 0
    %763 = vmatpush.msra.mxu0 0.0
    %764 = vmatpush.msra.mxu0 0.0
    %765 = vmatpush.msra.mxu0 0.0
    %766 = vmatpush.msra.mxu0 0.0
    %767 = vmatpush.msra.mxu0 0.0
    %768 = vmatpush.msra.mxu0 0.0
    %769 = vmatpush.msra.mxu0 0.0
    %770 = vmatpush.msra.mxu0 0.0
    %771 = vmatpush.msra.mxu0 0.0
    %772 = vmatpush.msra.mxu0 0.0
    %773 = vmatpush.msra.mxu0 0.0
    %774 = vmatpush.msra.mxu0 0.0
    %775 = vmatpush.msra.mxu0 0.0
    %776 = vmatpush.msra.mxu0 0.0
    %777 = vmatpush.msra.mxu0 0.0
    %778 = vmatpush.msra.mxu0 %v55
    %779 = vmatmul.f32.gmra.mxu0 %v761
    %v780 = vpop.f32.mrf.mxu0
    %v781 = vadd.f32 %v157, %v780
    %782 = vdwg.mxu0
    %783 = vmatpush.msra.mxu0 0.0
    %784 = vmatpush.msra.mxu0 0.0
    %785 = vmatpush.msra.mxu0 0.0
    %786 = vmatpush.msra.mxu0 0.0
    %787 = vmatpush.msra.mxu0 0.0
    %788 = vmatpush.msra.mxu0 0.0
    %789 = vmatpush.msra.mxu0 0.0
    %790 = vmatpush.msra.mxu0 0.0
    %791 = vmatpush.msra.mxu0 0.0
    %792 = vmatpush.msra.mxu0 0.0
    %793 = vmatpush.msra.mxu0 0.0
    %794 = vmatpush.msra.mxu0 0.0
    %795 = vmatpush.msra.mxu0 0.0
    %796 = vmatpush.msra.mxu0 0.0
    %797 = vmatpush.msra.mxu0 0.0
    %798 = vmatpush.msra.mxu0 %v51
    %799 = vmatmul.f32.gmra.mxu0 %v761
    %v800 = vpop.f32.mrf.mxu0
    %v801 = vadd.f32 %v718, %v800
    %802 = vdwg.mxu0
    %v803 = vadd.f32 %v801, %v204
    %v804 = vxor.u32 %v803, 2147483648
    %v805 = vmul.f32 %v804, 1.442695
    %v806 = vpow.pop %v805
    %v807 = vadd.f32 %v806, 1.0
    %v808 = vrcp.pop %v807
    %v809 = vmul.f32 %v807, %v808
    %v810 = vsub.f32 1.0, %v809
    %v811 = vmul.f32 %v808, %v810
    %v812 = vadd.f32 %v808, %v811
    %vm813 = vweird.f32 %v807
    %vm814 = vweird.f32 %v808
    %vm815 = vmor %vm813, %vm814
    %v816 = vsel %vm815, %v808, %v812
    %v817 = vand.u32 2147483647, %v807
    %vm818 = vcmp.eq.f32.partialorder %v817, 8.507059e+37
    %v819 = vand.u32 %v807, 2147483648
    %v820 = vor.u32 1.1754944e-38, %v819
    %v821 = vsel %vm818, %v820, %v816
    %v822 = vmul.f32 1.0, %v821
    %823 = vmatpush.msra.mxu0 0.0
    %824 = vmatpush.msra.mxu0 0.0
    %825 = vmatpush.msra.mxu0 0.0
    %826 = vmatpush.msra.mxu0 0.0
    %827 = vmatpush.msra.mxu0 0.0
    %828 = vmatpush.msra.mxu0 0.0
    %829 = vmatpush.msra.mxu0 0.0
    %830 = vmatpush.msra.mxu0 0.0
    %831 = vmatpush.msra.mxu0 0.0
    %832 = vmatpush.msra.mxu0 0.0
    %833 = vmatpush.msra.mxu0 0.0
    %834 = vmatpush.msra.mxu0 0.0
    %835 = vmatpush.msra.mxu0 0.0
    %836 = vmatpush.msra.mxu0 0.0
    %837 = vmatpush.msra.mxu0 0.0
    %838 = vmatpush.msra.mxu0 %v53
    %839 = vmatmul.f32.gmra.mxu0 %v761
    %v840 = vpop.f32.mrf.mxu0
    %v841 = vadd.f32 %v738, %v840
    %842 = vdwg.mxu0
    %v843 = vadd.f32 %v841, %v247
    %v844 = vxor.u32 %v843, 2147483648
    %v845 = vmul.f32 %v844, 1.442695
    %v846 = vpow.pop %v845
    %v847 = vadd.f32 %v846, 1.0
    %v848 = vrcp.pop %v847
    %v849 = vmul.f32 %v847, %v848
    %v850 = vsub.f32 1.0, %v849
    %v851 = vmul.f32 %v848, %v850
    %v852 = vadd.f32 %v848, %v851
    %vm853 = vweird.f32 %v847
    %vm854 = vweird.f32 %v848
    %vm855 = vmor %vm853, %vm854
    %v856 = vsel %vm855, %v848, %v852
    %v857 = vand.u32 2147483647, %v847
    %vm858 = vcmp.eq.f32.partialorder %v857, 8.507059e+37
    %v859 = vand.u32 %v847, 2147483648
    %v860 = vor.u32 1.1754944e-38, %v859
    %v861 = vsel %vm858, %v860, %v856
    %v862 = vmul.f32 1.0, %v861
    %v863 = vmul.f32 %v822, %v758
    %v864 = vadd.f32 %v781, %v863
    %v865 = vtanh.pop %v864
    %v866 = vsub.f32 1.0, %v862
    %v867 = vmul.f32 %v866, %v865
    %v868 = vmul.f32 %v862, %v672
    %v869 = vadd.f32 %v867, %v868
    %v871 = vsel %vm89, %v869, 0
    %873 = vmatpush.msra.mxu0 0.0
    %874 = vmatpush.msra.mxu0 0.0
    %875 = vmatpush.msra.mxu0 0.0
    %876 = vmatpush.msra.mxu0 0.0
    %877 = vmatpush.msra.mxu0 0.0
    %878 = vmatpush.msra.mxu0 0.0
    %879 = vmatpush.msra.mxu0 0.0
    %880 = vmatpush.msra.mxu0 0.0
    %881 = vmatpush.msra.mxu0 0.0
    %882 = vmatpush.msra.mxu0 0.0
    %883 = vmatpush.msra.mxu0 0.0
    %884 = vmatpush.msra.mxu0 0.0
    %885 = vmatpush.msra.mxu0 %v85
    %886 = vmatpush.msra.mxu0 %v84
    %887 = vmatpush.msra.mxu0 %v83
    %888 = vmatpush.msra.mxu0 %v82
    %889 = vmatmul.f32.gmra.mxu0 %v871
    %v890 = vpop.f32.mrf.mxu0
    %v891 = vadd.f32 %v277, %v890
    %892 = vdwg.mxu0
    %s893 = scalar_lea.vmem %s7, 6
    %894 = vst.msk [vmem:[%s893] sm:$0x3] %vm302, %v891
    %s895 = scalar_lea.vmem %s0, 8
    %v896 = vld [vmem:[%s895] sm:$0x3]
    %897 = vmatpush.msra.mxu0 0.0
    %898 = vmatpush.msra.mxu0 0.0
    %899 = vmatpush.msra.mxu0 0.0
    %900 = vmatpush.msra.mxu0 0.0
    %901 = vmatpush.msra.mxu0 0.0
    %902 = vmatpush.msra.mxu0 0.0
    %903 = vmatpush.msra.mxu0 0.0
    %904 = vmatpush.msra.mxu0 0.0
    %905 = vmatpush.msra.mxu0 0.0
    %906 = vmatpush.msra.mxu0 0.0
    %907 = vmatpush.msra.mxu0 0.0
    %908 = vmatpush.msra.mxu0 0.0
    %909 = vmatpush.msra.mxu0 %v59
    %910 = vmatpush.msra.mxu0 %v58
    %911 = vmatpush.msra.mxu0 %v57
    %912 = vmatpush.msra.mxu0 %v56
    %913 = vmatmul.f32.gmra.mxu0 %v871
    %v914 = vpop.f32.mrf.mxu0
    %v915 = vadd.f32 0.0, %v914
    %916 = vdwg.mxu0
    %917 = vmatpush.msra.mxu0 0.0
    %918 = vmatpush.msra.mxu0 0.0
    %919 = vmatpush.msra.mxu0 0.0
    %920 = vmatpush.msra.mxu0 0.0
    %921 = vmatpush.msra.mxu0 0.0
    %922 = vmatpush.msra.mxu0 0.0
    %923 = vmatpush.msra.mxu0 0.0
    %924 = vmatpush.msra.mxu0 0.0
    %925 = vmatpush.msra.mxu0 0.0
    %926 = vmatpush.msra.mxu0 0.0
    %927 = vmatpush.msra.mxu0 0.0
    %928 = vmatpush.msra.mxu0 0.0
    %929 = vmatpush.msra.mxu0 %v64
    %930 = vmatpush.msra.mxu0 %v63
    %931 = vmatpush.msra.mxu0 %v62
    %932 = vmatpush.msra.mxu0 %v61
    %933 = vmatmul.f32.gmra.mxu0 %v871
    %v934 = vpop.f32.mrf.mxu0
    %v935 = vadd.f32 0.0, %v934
    %936 = vdwg.mxu0
    %937 = vmatpush.msra.mxu0 0.0
    %938 = vmatpush.msra.mxu0 0.0
    %939 = vmatpush.msra.mxu0 0.0
    %940 = vmatpush.msra.mxu0 0.0
    %941 = vmatpush.msra.mxu0 0.0
    %942 = vmatpush.msra.mxu0 0.0
    %943 = vmatpush.msra.mxu0 0.0
    %944 = vmatpush.msra.mxu0 0.0
    %945 = vmatpush.msra.mxu0 0.0
    %946 = vmatpush.msra.mxu0 0.0
    %947 = vmatpush.msra.mxu0 0.0
    %948 = vmatpush.msra.mxu0 0.0
    %949 = vmatpush.msra.mxu0 %v69
    %950 = vmatpush.msra.mxu0 %v68
    %951 = vmatpush.msra.mxu0 %v67
    %952 = vmatpush.msra.mxu0 %v66
    %953 = vmatmul.f32.gmra.mxu0 %v871
    %v954 = vpop.f32.mrf.mxu0
    %v955 = vadd.f32 %v134, %v954
    %956 = vdwg.mxu0
    %v958 = vsel %vm159, %v896, 0
    %960 = vmatpush.msra.mxu0 0.0
    %961 = vmatpush.msra.mxu0 0.0
    %962 = vmatpush.msra.mxu0 0.0
    %963 = vmatpush.msra.mxu0 0.0
    %964 = vmatpush.msra.mxu0 0.0
    %965 = vmatpush.msra.mxu0 0.0
    %966 = vmatpush.msra.mxu0 0.0
    %967 = vmatpush.msra.mxu0 0.0
    %968 = vmatpush.msra.mxu0 0.0
    %969 = vmatpush.msra.mxu0 0.0
    %970 = vmatpush.msra.mxu0 0.0
    %971 = vmatpush.msra.mxu0 0.0
    %972 = vmatpush.msra.mxu0 0.0
    %973 = vmatpush.msra.mxu0 0.0
    %974 = vmatpush.msra.mxu0 0.0
    %975 = vmatpush.msra.mxu0 %v55
    %976 = vmatmul.f32.gmra.mxu0 %v958
    %v977 = vpop.f32.mrf.mxu0
    %v978 = vadd.f32 %v157, %v977
    %979 = vdwg.mxu0
    %980 = vmatpush.msra.mxu0 0.0
    %981 = vmatpush.msra.mxu0 0.0
    %982 = vmatpush.msra.mxu0 0.0
    %983 = vmatpush.msra.mxu0 0.0
    %984 = vmatpush.msra.mxu0 0.0
    %985 = vmatpush.msra.mxu0 0.0
    %986 = vmatpush.msra.mxu0 0.0
    %987 = vmatpush.msra.mxu0 0.0
    %988 = vmatpush.msra.mxu0 0.0
    %989 = vmatpush.msra.mxu0 0.0
    %990 = vmatpush.msra.mxu0 0.0
    %991 = vmatpush.msra.mxu0 0.0
    %992 = vmatpush.msra.mxu0 0.0
    %993 = vmatpush.msra.mxu0 0.0
    %994 = vmatpush.msra.mxu0 0.0
    %995 = vmatpush.msra.mxu0 %v51
    %996 = vmatmul.f32.gmra.mxu0 %v958
    %v997 = vpop.f32.mrf.mxu0
    %v998 = vadd.f32 %v915, %v997
    %999 = vdwg.mxu0
    %v1000 = vadd.f32 %v998, %v204
    %v1001 = vxor.u32 %v1000, 2147483648
    %v1002 = vmul.f32 %v1001, 1.442695
    %v1003 = vpow.pop %v1002
    %v1004 = vadd.f32 %v1003, 1.0
    %v1005 = vrcp.pop %v1004
    %v1006 = vmul.f32 %v1004, %v1005
    %v1007 = vsub.f32 1.0, %v1006
    %v1008 = vmul.f32 %v1005, %v1007
    %v1009 = vadd.f32 %v1005, %v1008
    %vm1010 = vweird.f32 %v1004
    %vm1011 = vweird.f32 %v1005
    %vm1012 = vmor %vm1010, %vm1011
    %v1013 = vsel %vm1012, %v1005, %v1009
    %v1014 = vand.u32 2147483647, %v1004
    %vm1015 = vcmp.eq.f32.partialorder %v1014, 8.507059e+37
    %v1016 = vand.u32 %v1004, 2147483648
    %v1017 = vor.u32 1.1754944e-38, %v1016
    %v1018 = vsel %vm1015, %v1017, %v1013
    %v1019 = vmul.f32 1.0, %v1018
    %1020 = vmatpush.msra.mxu0 0.0
    %1021 = vmatpush.msra.mxu0 0.0
    %1022 = vmatpush.msra.mxu0 0.0
    %1023 = vmatpush.msra.mxu0 0.0
    %1024 = vmatpush.msra.mxu0 0.0
    %1025 = vmatpush.msra.mxu0 0.0
    %1026 = vmatpush.msra.mxu0 0.0
    %1027 = vmatpush.msra.mxu0 0.0
    %1028 = vmatpush.msra.mxu0 0.0
    %1029 = vmatpush.msra.mxu0 0.0
    %1030 = vmatpush.msra.mxu0 0.0
    %1031 = vmatpush.msra.mxu0 0.0
    %1032 = vmatpush.msra.mxu0 0.0
    %1033 = vmatpush.msra.mxu0 0.0
    %1034 = vmatpush.msra.mxu0 0.0
    %1035 = vmatpush.msra.mxu0 %v53
    %1036 = vmatmul.f32.gmra.mxu0 %v958
    %v1037 = vpop.f32.mrf.mxu0
    %v1038 = vadd.f32 %v935, %v1037
    %1039 = vdwg.mxu0
    %v1040 = vadd.f32 %v1038, %v247
    %v1041 = vxor.u32 %v1040, 2147483648
    %v1042 = vmul.f32 %v1041, 1.442695
    %v1043 = vpow.pop %v1042
    %v1044 = vadd.f32 %v1043, 1.0
    %v1045 = vrcp.pop %v1044
    %v1046 = vmul.f32 %v1044, %v1045
    %v1047 = vsub.f32 1.0, %v1046
    %v1048 = vmul.f32 %v1045, %v1047
    %v1049 = vadd.f32 %v1045, %v1048
    %vm1050 = vweird.f32 %v1044
    %vm1051 = vweird.f32 %v1045
    %vm1052 = vmor %vm1050, %vm1051
    %v1053 = vsel %vm1052, %v1045, %v1049
    %v1054 = vand.u32 2147483647, %v1044
    %vm1055 = vcmp.eq.f32.partialorder %v1054, 8.507059e+37
    %v1056 = vand.u32 %v1044, 2147483648
    %v1057 = vor.u32 1.1754944e-38, %v1056
    %v1058 = vsel %vm1055, %v1057, %v1053
    %v1059 = vmul.f32 1.0, %v1058
    %v1060 = vmul.f32 %v1019, %v955
    %v1061 = vadd.f32 %v978, %v1060
    %v1062 = vtanh.pop %v1061
    %v1063 = vsub.f32 1.0, %v1059
    %v1064 = vmul.f32 %v1063, %v1062
    %v1065 = vmul.f32 %v1059, %v869
    %v1066 = vadd.f32 %v1064, %v1065
    %v1068 = vsel %vm89, %v1066, 0
    %1070 = vmatpush.msra.mxu0 0.0
    %1071 = vmatpush.msra.mxu0 0.0
    %1072 = vmatpush.msra.mxu0 0.0
    %1073 = vmatpush.msra.mxu0 0.0
    %1074 = vmatpush.msra.mxu0 0.0
    %1075 = vmatpush.msra.mxu0 0.0
    %1076 = vmatpush.msra.mxu0 0.0
    %1077 = vmatpush.msra.mxu0 0.0
    %1078 = vmatpush.msra.mxu0 0.0
    %1079 = vmatpush.msra.mxu0 0.0
    %1080 = vmatpush.msra.mxu0 0.0
    %1081 = vmatpush.msra.mxu0 0.0
    %1082 = vmatpush.msra.mxu0 %v85
    %1083 = vmatpush.msra.mxu0 %v84
    %1084 = vmatpush.msra.mxu0 %v83
    %1085 = vmatpush.msra.mxu0 %v82
    %1086 = vmatmul.f32.gmra.mxu0 %v1068
    %v1087 = vpop.f32.mrf.mxu0
    %v1088 = vadd.f32 %v277, %v1087
    %1089 = vdwg.mxu0
    %s1090 = scalar_lea.vmem %s7, 8
    %1091 = vst.msk [vmem:[%s1090] sm:$0x3] %vm302, %v1088
    %s1092 = scalar_lea.vmem %s0, 10
    %v1093 = vld [vmem:[%s1092] sm:$0x3]
    %1094 = vmatpush.msra.mxu0 0.0
    %1095 = vmatpush.msra.mxu0 0.0
    %1096 = vmatpush.msra.mxu0 0.0
    %1097 = vmatpush.msra.mxu0 0.0
    %1098 = vmatpush.msra.mxu0 0.0
    %1099 = vmatpush.msra.mxu0 0.0
    %1100 = vmatpush.msra.mxu0 0.0
    %1101 = vmatpush.msra.mxu0 0.0
    %1102 = vmatpush.msra.mxu0 0.0
    %1103 = vmatpush.msra.mxu0 0.0
    %1104 = vmatpush.msra.mxu0 0.0
    %1105 = vmatpush.msra.mxu0 0.0
    %1106 = vmatpush.msra.mxu0 %v59
    %1107 = vmatpush.msra.mxu0 %v58
    %1108 = vmatpush.msra.mxu0 %v57
    %1109 = vmatpush.msra.mxu0 %v56
    %1110 = vmatmul.f32.gmra.mxu0 %v1068
    %v1111 = vpop.f32.mrf.mxu0
    %v1112 = vadd.f32 0.0, %v1111
    %1113 = vdwg.mxu0
    %1114 = vmatpush.msra.mxu0 0.0
    %1115 = vmatpush.msra.mxu0 0.0
    %1116 = vmatpush.msra.mxu0 0.0
    %1117 = vmatpush.msra.mxu0 0.0
    %1118 = vmatpush.msra.mxu0 0.0
    %1119 = vmatpush.msra.mxu0 0.0
    %1120 = vmatpush.msra.mxu0 0.0
    %1121 = vmatpush.msra.mxu0 0.0
    %1122 = vmatpush.msra.mxu0 0.0
    %1123 = vmatpush.msra.mxu0 0.0
    %1124 = vmatpush.msra.mxu0 0.0
    %1125 = vmatpush.msra.mxu0 0.0
    %1126 = vmatpush.msra.mxu0 %v64
    %1127 = vmatpush.msra.mxu0 %v63
    %1128 = vmatpush.msra.mxu0 %v62
    %1129 = vmatpush.msra.mxu0 %v61
    %1130 = vmatmul.f32.gmra.mxu0 %v1068
    %v1131 = vpop.f32.mrf.mxu0
    %v1132 = vadd.f32 0.0, %v1131
    %1133 = vdwg.mxu0
    %1134 = vmatpush.msra.mxu0 0.0
    %1135 = vmatpush.msra.mxu0 0.0
    %1136 = vmatpush.msra.mxu0 0.0
    %1137 = vmatpush.msra.mxu0 0.0
    %1138 = vmatpush.msra.mxu0 0.0
    %1139 = vmatpush.msra.mxu0 0.0
    %1140 = vmatpush.msra.mxu0 0.0
    %1141 = vmatpush.msra.mxu0 0.0
    %1142 = vmatpush.msra.mxu0 0.0
    %1143 = vmatpush.msra.mxu0 0.0
    %1144 = vmatpush.msra.mxu0 0.0
    %1145 = vmatpush.msra.mxu0 0.0
    %1146 = vmatpush.msra.mxu0 %v69
    %1147 = vmatpush.msra.mxu0 %v68
    %1148 = vmatpush.msra.mxu0 %v67
    %1149 = vmatpush.msra.mxu0 %v66
    %1150 = vmatmul.f32.gmra.mxu0 %v1068
    %v1151 = vpop.f32.mrf.mxu0
    %v1152 = vadd.f32 %v134, %v1151
    %1153 = vdwg.mxu0
    %v1155 = vsel %vm159, %v1093, 0
    %1157 = vmatpush.msra.mxu0 0.0
    %1158 = vmatpush.msra.mxu0 0.0
    %1159 = vmatpush.msra.mxu0 0.0
    %1160 = vmatpush.msra.mxu0 0.0
    %1161 = vmatpush.msra.mxu0 0.0
    %1162 = vmatpush.msra.mxu0 0.0
    %1163 = vmatpush.msra.mxu0 0.0
    %1164 = vmatpush.msra.mxu0 0.0
    %1165 = vmatpush.msra.mxu0 0.0
    %1166 = vmatpush.msra.mxu0 0.0
    %1167 = vmatpush.msra.mxu0 0.0
    %1168 = vmatpush.msra.mxu0 0.0
    %1169 = vmatpush.msra.mxu0 0.0
    %1170 = vmatpush.msra.mxu0 0.0
    %1171 = vmatpush.msra.mxu0 0.0
    %1172 = vmatpush.msra.mxu0 %v55
    %1173 = vmatmul.f32.gmra.mxu0 %v1155
    %v1174 = vpop.f32.mrf.mxu0
    %v1175 = vadd.f32 %v157, %v1174
    %1176 = vdwg.mxu0
    %1177 = vmatpush.msra.mxu0 0.0
    %1178 = vmatpush.msra.mxu0 0.0
    %1179 = vmatpush.msra.mxu0 0.0
    %1180 = vmatpush.msra.mxu0 0.0
    %1181 = vmatpush.msra.mxu0 0.0
    %1182 = vmatpush.msra.mxu0 0.0
    %1183 = vmatpush.msra.mxu0 0.0
    %1184 = vmatpush.msra.mxu0 0.0
    %1185 = vmatpush.msra.mxu0 0.0
    %1186 = vmatpush.msra.mxu0 0.0
    %1187 = vmatpush.msra.mxu0 0.0
    %1188 = vmatpush.msra.mxu0 0.0
    %1189 = vmatpush.msra.mxu0 0.0
    %1190 = vmatpush.msra.mxu0 0.0
    %1191 = vmatpush.msra.mxu0 0.0
    %1192 = vmatpush.msra.mxu0 %v51
    %1193 = vmatmul.f32.gmra.mxu0 %v1155
    %v1194 = vpop.f32.mrf.mxu0
    %v1195 = vadd.f32 %v1112, %v1194
    %1196 = vdwg.mxu0
    %v1197 = vadd.f32 %v1195, %v204
    %v1198 = vxor.u32 %v1197, 2147483648
    %v1199 = vmul.f32 %v1198, 1.442695
    %v1200 = vpow.pop %v1199
    %v1201 = vadd.f32 %v1200, 1.0
    %v1202 = vrcp.pop %v1201
    %v1203 = vmul.f32 %v1201, %v1202
    %v1204 = vsub.f32 1.0, %v1203
    %v1205 = vmul.f32 %v1202, %v1204
    %v1206 = vadd.f32 %v1202, %v1205
    %vm1207 = vweird.f32 %v1201
    %vm1208 = vweird.f32 %v1202
    %vm1209 = vmor %vm1207, %vm1208
    %v1210 = vsel %vm1209, %v1202, %v1206
    %v1211 = vand.u32 2147483647, %v1201
    %vm1212 = vcmp.eq.f32.partialorder %v1211, 8.507059e+37
    %v1213 = vand.u32 %v1201, 2147483648
    %v1214 = vor.u32 1.1754944e-38, %v1213
    %v1215 = vsel %vm1212, %v1214, %v1210
    %v1216 = vmul.f32 1.0, %v1215
    %1217 = vmatpush.msra.mxu0 0.0
    %1218 = vmatpush.msra.mxu0 0.0
    %1219 = vmatpush.msra.mxu0 0.0
    %1220 = vmatpush.msra.mxu0 0.0
    %1221 = vmatpush.msra.mxu0 0.0
    %1222 = vmatpush.msra.mxu0 0.0
    %1223 = vmatpush.msra.mxu0 0.0
    %1224 = vmatpush.msra.mxu0 0.0
    %1225 = vmatpush.msra.mxu0 0.0
    %1226 = vmatpush.msra.mxu0 0.0
    %1227 = vmatpush.msra.mxu0 0.0
    %1228 = vmatpush.msra.mxu0 0.0
    %1229 = vmatpush.msra.mxu0 0.0
    %1230 = vmatpush.msra.mxu0 0.0
    %1231 = vmatpush.msra.mxu0 0.0
    %1232 = vmatpush.msra.mxu0 %v53
    %1233 = vmatmul.f32.gmra.mxu0 %v1155
    %v1234 = vpop.f32.mrf.mxu0
    %v1235 = vadd.f32 %v1132, %v1234
    %1236 = vdwg.mxu0
    %v1237 = vadd.f32 %v1235, %v247
    %v1238 = vxor.u32 %v1237, 2147483648
    %v1239 = vmul.f32 %v1238, 1.442695
    %v1240 = vpow.pop %v1239
    %v1241 = vadd.f32 %v1240, 1.0
    %v1242 = vrcp.pop %v1241
    %v1243 = vmul.f32 %v1241, %v1242
    %v1244 = vsub.f32 1.0, %v1243
    %v1245 = vmul.f32 %v1242, %v1244
    %v1246 = vadd.f32 %v1242, %v1245
    %vm1247 = vweird.f32 %v1241
    %vm1248 = vweird.f32 %v1242
    %vm1249 = vmor %vm1247, %vm1248
    %v1250 = vsel %vm1249, %v1242, %v1246
    %v1251 = vand.u32 2147483647, %v1241
    %vm1252 = vcmp.eq.f32.partialorder %v1251, 8.507059e+37
    %v1253 = vand.u32 %v1241, 2147483648
    %v1254 = vor.u32 1.1754944e-38, %v1253
    %v1255 = vsel %vm1252, %v1254, %v1250
    %v1256 = vmul.f32 1.0, %v1255
    %v1257 = vmul.f32 %v1216, %v1152
    %v1258 = vadd.f32 %v1175, %v1257
    %v1259 = vtanh.pop %v1258
    %v1260 = vsub.f32 1.0, %v1256
    %v1261 = vmul.f32 %v1260, %v1259
    %v1262 = vmul.f32 %v1256, %v1066
    %v1263 = vadd.f32 %v1261, %v1262
    %v1265 = vsel %vm89, %v1263, 0
    %1267 = vmatpush.msra.mxu0 0.0
    %1268 = vmatpush.msra.mxu0 0.0
    %1269 = vmatpush.msra.mxu0 0.0
    %1270 = vmatpush.msra.mxu0 0.0
    %1271 = vmatpush.msra.mxu0 0.0
    %1272 = vmatpush.msra.mxu0 0.0
    %1273 = vmatpush.msra.mxu0 0.0
    %1274 = vmatpush.msra.mxu0 0.0
    %1275 = vmatpush.msra.mxu0 0.0
    %1276 = vmatpush.msra.mxu0 0.0
    %1277 = vmatpush.msra.mxu0 0.0
    %1278 = vmatpush.msra.mxu0 0.0
    %1279 = vmatpush.msra.mxu0 %v85
    %1280 = vmatpush.msra.mxu0 %v84
    %1281 = vmatpush.msra.mxu0 %v83
    %1282 = vmatpush.msra.mxu0 %v82
    %1283 = vmatmul.f32.gmra.mxu0 %v1265
    %v1284 = vpop.f32.mrf.mxu0
    %v1285 = vadd.f32 %v277, %v1284
    %1286 = vdwg.mxu0
    %s1287 = scalar_lea.vmem %s7, 10
    %1288 = vst.msk [vmem:[%s1287] sm:$0x3] %vm302, %v1285
    %s1289 = scalar_lea.vmem %s0, 12
    %v1290 = vld [vmem:[%s1289] sm:$0x3]
    %1291 = vmatpush.msra.mxu0 0.0
    %1292 = vmatpush.msra.mxu0 0.0
    %1293 = vmatpush.msra.mxu0 0.0
    %1294 = vmatpush.msra.mxu0 0.0
    %1295 = vmatpush.msra.mxu0 0.0
    %1296 = vmatpush.msra.mxu0 0.0
    %1297 = vmatpush.msra.mxu0 0.0
    %1298 = vmatpush.msra.mxu0 0.0
    %1299 = vmatpush.msra.mxu0 0.0
    %1300 = vmatpush.msra.mxu0 0.0
    %1301 = vmatpush.msra.mxu0 0.0
    %1302 = vmatpush.msra.mxu0 0.0
    %1303 = vmatpush.msra.mxu0 %v59
    %1304 = vmatpush.msra.mxu0 %v58
    %1305 = vmatpush.msra.mxu0 %v57
    %1306 = vmatpush.msra.mxu0 %v56
    %1307 = vmatmul.f32.gmra.mxu0 %v1265
    %v1308 = vpop.f32.mrf.mxu0
    %v1309 = vadd.f32 0.0, %v1308
    %1310 = vdwg.mxu0
    %1311 = vmatpush.msra.mxu0 0.0
    %1312 = vmatpush.msra.mxu0 0.0
    %1313 = vmatpush.msra.mxu0 0.0
    %1314 = vmatpush.msra.mxu0 0.0
    %1315 = vmatpush.msra.mxu0 0.0
    %1316 = vmatpush.msra.mxu0 0.0
    %1317 = vmatpush.msra.mxu0 0.0
    %1318 = vmatpush.msra.mxu0 0.0
    %1319 = vmatpush.msra.mxu0 0.0
    %1320 = vmatpush.msra.mxu0 0.0
    %1321 = vmatpush.msra.mxu0 0.0
    %1322 = vmatpush.msra.mxu0 0.0
    %1323 = vmatpush.msra.mxu0 %v64
    %1324 = vmatpush.msra.mxu0 %v63
    %1325 = vmatpush.msra.mxu0 %v62
    %1326 = vmatpush.msra.mxu0 %v61
    %1327 = vmatmul.f32.gmra.mxu0 %v1265
    %v1328 = vpop.f32.mrf.mxu0
    %v1329 = vadd.f32 0.0, %v1328
    %1330 = vdwg.mxu0
    %1331 = vmatpush.msra.mxu0 0.0
    %1332 = vmatpush.msra.mxu0 0.0
    %1333 = vmatpush.msra.mxu0 0.0
    %1334 = vmatpush.msra.mxu0 0.0
    %1335 = vmatpush.msra.mxu0 0.0
    %1336 = vmatpush.msra.mxu0 0.0
    %1337 = vmatpush.msra.mxu0 0.0
    %1338 = vmatpush.msra.mxu0 0.0
    %1339 = vmatpush.msra.mxu0 0.0
    %1340 = vmatpush.msra.mxu0 0.0
    %1341 = vmatpush.msra.mxu0 0.0
    %1342 = vmatpush.msra.mxu0 0.0
    %1343 = vmatpush.msra.mxu0 %v69
    %1344 = vmatpush.msra.mxu0 %v68
    %1345 = vmatpush.msra.mxu0 %v67
    %1346 = vmatpush.msra.mxu0 %v66
    %1347 = vmatmul.f32.gmra.mxu0 %v1265
    %v1348 = vpop.f32.mrf.mxu0
    %v1349 = vadd.f32 %v134, %v1348
    %1350 = vdwg.mxu0
    %v1352 = vsel %vm159, %v1290, 0
    %1354 = vmatpush.msra.mxu0 0.0
    %1355 = vmatpush.msra.mxu0 0.0
    %1356 = vmatpush.msra.mxu0 0.0
    %1357 = vmatpush.msra.mxu0 0.0
    %1358 = vmatpush.msra.mxu0 0.0
    %1359 = vmatpush.msra.mxu0 0.0
    %1360 = vmatpush.msra.mxu0 0.0
    %1361 = vmatpush.msra.mxu0 0.0
    %1362 = vmatpush.msra.mxu0 0.0
    %1363 = vmatpush.msra.mxu0 0.0
    %1364 = vmatpush.msra.mxu0 0.0
    %1365 = vmatpush.msra.mxu0 0.0
    %1366 = vmatpush.msra.mxu0 0.0
    %1367 = vmatpush.msra.mxu0 0.0
    %1368 = vmatpush.msra.mxu0 0.0
    %1369 = vmatpush.msra.mxu0 %v55
    %1370 = vmatmul.f32.gmra.mxu0 %v1352
    %v1371 = vpop.f32.mrf.mxu0
    %v1372 = vadd.f32 %v157, %v1371
    %1373 = vdwg.mxu0
    %1374 = vmatpush.msra.mxu0 0.0
    %1375 = vmatpush.msra.mxu0 0.0
    %1376 = vmatpush.msra.mxu0 0.0
    %1377 = vmatpush.msra.mxu0 0.0
    %1378 = vmatpush.msra.mxu0 0.0
    %1379 = vmatpush.msra.mxu0 0.0
    %1380 = vmatpush.msra.mxu0 0.0
    %1381 = vmatpush.msra.mxu0 0.0
    %1382 = vmatpush.msra.mxu0 0.0
    %1383 = vmatpush.msra.mxu0 0.0
    %1384 = vmatpush.msra.mxu0 0.0
    %1385 = vmatpush.msra.mxu0 0.0
    %1386 = vmatpush.msra.mxu0 0.0
    %1387 = vmatpush.msra.mxu0 0.0
    %1388 = vmatpush.msra.mxu0 0.0
    %1389 = vmatpush.msra.mxu0 %v51
    %1390 = vmatmul.f32.gmra.mxu0 %v1352
    %v1391 = vpop.f32.mrf.mxu0
    %v1392 = vadd.f32 %v1309, %v1391
    %1393 = vdwg.mxu0
    %v1394 = vadd.f32 %v1392, %v204
    %v1395 = vxor.u32 %v1394, 2147483648
    %v1396 = vmul.f32 %v1395, 1.442695
    %v1397 = vpow.pop %v1396
    %v1398 = vadd.f32 %v1397, 1.0
    %v1399 = vrcp.pop %v1398
    %v1400 = vmul.f32 %v1398, %v1399
    %v1401 = vsub.f32 1.0, %v1400
    %v1402 = vmul.f32 %v1399, %v1401
    %v1403 = vadd.f32 %v1399, %v1402
    %vm1404 = vweird.f32 %v1398
    %vm1405 = vweird.f32 %v1399
    %vm1406 = vmor %vm1404, %vm1405
    %v1407 = vsel %vm1406, %v1399, %v1403
    %v1408 = vand.u32 2147483647, %v1398
    %vm1409 = vcmp.eq.f32.partialorder %v1408, 8.507059e+37
    %v1410 = vand.u32 %v1398, 2147483648
    %v1411 = vor.u32 1.1754944e-38, %v1410
    %v1412 = vsel %vm1409, %v1411, %v1407
    %v1413 = vmul.f32 1.0, %v1412
    %1414 = vmatpush.msra.mxu0 0.0
    %1415 = vmatpush.msra.mxu0 0.0
    %1416 = vmatpush.msra.mxu0 0.0
    %1417 = vmatpush.msra.mxu0 0.0
    %1418 = vmatpush.msra.mxu0 0.0
    %1419 = vmatpush.msra.mxu0 0.0
    %1420 = vmatpush.msra.mxu0 0.0
    %1421 = vmatpush.msra.mxu0 0.0
    %1422 = vmatpush.msra.mxu0 0.0
    %1423 = vmatpush.msra.mxu0 0.0
    %1424 = vmatpush.msra.mxu0 0.0
    %1425 = vmatpush.msra.mxu0 0.0
    %1426 = vmatpush.msra.mxu0 0.0
    %1427 = vmatpush.msra.mxu0 0.0
    %1428 = vmatpush.msra.mxu0 0.0
    %1429 = vmatpush.msra.mxu0 %v53
    %1430 = vmatmul.f32.gmra.mxu0 %v1352
    %v1431 = vpop.f32.mrf.mxu0
    %v1432 = vadd.f32 %v1329, %v1431
    %1433 = vdwg.mxu0
    %v1434 = vadd.f32 %v1432, %v247
    %v1435 = vxor.u32 %v1434, 2147483648
    %v1436 = vmul.f32 %v1435, 1.442695
    %v1437 = vpow.pop %v1436
    %v1438 = vadd.f32 %v1437, 1.0
    %v1439 = vrcp.pop %v1438
    %v1440 = vmul.f32 %v1438, %v1439
    %v1441 = vsub.f32 1.0, %v1440
    %v1442 = vmul.f32 %v1439, %v1441
    %v1443 = vadd.f32 %v1439, %v1442
    %vm1444 = vweird.f32 %v1438
    %vm1445 = vweird.f32 %v1439
    %vm1446 = vmor %vm1444, %vm1445
    %v1447 = vsel %vm1446, %v1439, %v1443
    %v1448 = vand.u32 2147483647, %v1438
    %vm1449 = vcmp.eq.f32.partialorder %v1448, 8.507059e+37
    %v1450 = vand.u32 %v1438, 2147483648
    %v1451 = vor.u32 1.1754944e-38, %v1450
    %v1452 = vsel %vm1449, %v1451, %v1447
    %v1453 = vmul.f32 1.0, %v1452
    %v1454 = vmul.f32 %v1413, %v1349
    %v1455 = vadd.f32 %v1372, %v1454
    %v1456 = vtanh.pop %v1455
    %v1457 = vsub.f32 1.0, %v1453
    %v1458 = vmul.f32 %v1457, %v1456
    %v1459 = vmul.f32 %v1453, %v1263
    %v1460 = vadd.f32 %v1458, %v1459
    %v1462 = vsel %vm89, %v1460, 0
    %1464 = vmatpush.msra.mxu0 0.0
    %1465 = vmatpush.msra.mxu0 0.0
    %1466 = vmatpush.msra.mxu0 0.0
    %1467 = vmatpush.msra.mxu0 0.0
    %1468 = vmatpush.msra.mxu0 0.0
    %1469 = vmatpush.msra.mxu0 0.0
    %1470 = vmatpush.msra.mxu0 0.0
    %1471 = vmatpush.msra.mxu0 0.0
    %1472 = vmatpush.msra.mxu0 0.0
    %1473 = vmatpush.msra.mxu0 0.0
    %1474 = vmatpush.msra.mxu0 0.0
    %1475 = vmatpush.msra.mxu0 0.0
    %1476 = vmatpush.msra.mxu0 %v85
    %1477 = vmatpush.msra.mxu0 %v84
    %1478 = vmatpush.msra.mxu0 %v83
    %1479 = vmatpush.msra.mxu0 %v82
    %1480 = vmatmul.f32.gmra.mxu0 %v1462
    %v1481 = vpop.f32.mrf.mxu0
    %v1482 = vadd.f32 %v277, %v1481
    %1483 = vdwg.mxu0
    %s1484 = scalar_lea.vmem %s7, 12
    %1485 = vst.msk [vmem:[%s1484] sm:$0x3] %vm302, %v1482
    %s1486 = scalar_lea.vmem %s0, 14
    %v1487 = vld [vmem:[%s1486] sm:$0x3]
    %1488 = vmatpush.msra.mxu0 0.0
    %1489 = vmatpush.msra.mxu0 0.0
    %1490 = vmatpush.msra.mxu0 0.0
    %1491 = vmatpush.msra.mxu0 0.0
    %1492 = vmatpush.msra.mxu0 0.0
    %1493 = vmatpush.msra.mxu0 0.0
    %1494 = vmatpush.msra.mxu0 0.0
    %1495 = vmatpush.msra.mxu0 0.0
    %1496 = vmatpush.msra.mxu0 0.0
    %1497 = vmatpush.msra.mxu0 0.0
    %1498 = vmatpush.msra.mxu0 0.0
    %1499 = vmatpush.msra.mxu0 0.0
    %1500 = vmatpush.msra.mxu0 %v59
    %1501 = vmatpush.msra.mxu0 %v58
    %1502 = vmatpush.msra.mxu0 %v57
    %1503 = vmatpush.msra.mxu0 %v56
    %1504 = vmatmul.f32.gmra.mxu0 %v1462
    %v1505 = vpop.f32.mrf.mxu0
    %v1506 = vadd.f32 0.0, %v1505
    %1507 = vdwg.mxu0
    %1508 = vmatpush.msra.mxu0 0.0
    %1509 = vmatpush.msra.mxu0 0.0
    %1510 = vmatpush.msra.mxu0 0.0
    %1511 = vmatpush.msra.mxu0 0.0
    %1512 = vmatpush.msra.mxu0 0.0
    %1513 = vmatpush.msra.mxu0 0.0
    %1514 = vmatpush.msra.mxu0 0.0
    %1515 = vmatpush.msra.mxu0 0.0
    %1516 = vmatpush.msra.mxu0 0.0
    %1517 = vmatpush.msra.mxu0 0.0
    %1518 = vmatpush.msra.mxu0 0.0
    %1519 = vmatpush.msra.mxu0 0.0
    %1520 = vmatpush.msra.mxu0 %v64
    %1521 = vmatpush.msra.mxu0 %v63
    %1522 = vmatpush.msra.mxu0 %v62
    %1523 = vmatpush.msra.mxu0 %v61
    %1524 = vmatmul.f32.gmra.mxu0 %v1462
    %v1525 = vpop.f32.mrf.mxu0
    %v1526 = vadd.f32 0.0, %v1525
    %1527 = vdwg.mxu0
    %1528 = vmatpush.msra.mxu0 0.0
    %1529 = vmatpush.msra.mxu0 0.0
    %1530 = vmatpush.msra.mxu0 0.0
    %1531 = vmatpush.msra.mxu0 0.0
    %1532 = vmatpush.msra.mxu0 0.0
    %1533 = vmatpush.msra.mxu0 0.0
    %1534 = vmatpush.msra.mxu0 0.0
    %1535 = vmatpush.msra.mxu0 0.0
    %1536 = vmatpush.msra.mxu0 0.0
    %1537 = vmatpush.msra.mxu0 0.0
    %1538 = vmatpush.msra.mxu0 0.0
    %1539 = vmatpush.msra.mxu0 0.0
    %1540 = vmatpush.msra.mxu0 %v69
    %1541 = vmatpush.msra.mxu0 %v68
    %1542 = vmatpush.msra.mxu0 %v67
    %1543 = vmatpush.msra.mxu0 %v66
    %1544 = vmatmul.f32.gmra.mxu0 %v1462
    %v1545 = vpop.f32.mrf.mxu0
    %v1546 = vadd.f32 %v134, %v1545
    %1547 = vdwg.mxu0
    %v1549 = vsel %vm159, %v1487, 0
    %1551 = vmatpush.msra.mxu0 0.0
    %1552 = vmatpush.msra.mxu0 0.0
    %1553 = vmatpush.msra.mxu0 0.0
    %1554 = vmatpush.msra.mxu0 0.0
    %1555 = vmatpush.msra.mxu0 0.0
    %1556 = vmatpush.msra.mxu0 0.0
    %1557 = vmatpush.msra.mxu0 0.0
    %1558 = vmatpush.msra.mxu0 0.0
    %1559 = vmatpush.msra.mxu0 0.0
    %1560 = vmatpush.msra.mxu0 0.0
    %1561 = vmatpush.msra.mxu0 0.0
    %1562 = vmatpush.msra.mxu0 0.0
    %1563 = vmatpush.msra.mxu0 0.0
    %1564 = vmatpush.msra.mxu0 0.0
    %1565 = vmatpush.msra.mxu0 0.0
    %1566 = vmatpush.msra.mxu0 %v55
    %1567 = vmatmul.f32.gmra.mxu0 %v1549
    %v1568 = vpop.f32.mrf.mxu0
    %v1569 = vadd.f32 %v157, %v1568
    %1570 = vdwg.mxu0
    %1571 = vmatpush.msra.mxu0 0.0
    %1572 = vmatpush.msra.mxu0 0.0
    %1573 = vmatpush.msra.mxu0 0.0
    %1574 = vmatpush.msra.mxu0 0.0
    %1575 = vmatpush.msra.mxu0 0.0
    %1576 = vmatpush.msra.mxu0 0.0
    %1577 = vmatpush.msra.mxu0 0.0
    %1578 = vmatpush.msra.mxu0 0.0
    %1579 = vmatpush.msra.mxu0 0.0
    %1580 = vmatpush.msra.mxu0 0.0
    %1581 = vmatpush.msra.mxu0 0.0
    %1582 = vmatpush.msra.mxu0 0.0
    %1583 = vmatpush.msra.mxu0 0.0
    %1584 = vmatpush.msra.mxu0 0.0
    %1585 = vmatpush.msra.mxu0 0.0
    %1586 = vmatpush.msra.mxu0 %v51
    %1587 = vmatmul.f32.gmra.mxu0 %v1549
    %v1588 = vpop.f32.mrf.mxu0
    %v1589 = vadd.f32 %v1506, %v1588
    %1590 = vdwg.mxu0
    %v1591 = vadd.f32 %v1589, %v204
    %v1592 = vxor.u32 %v1591, 2147483648
    %v1593 = vmul.f32 %v1592, 1.442695
    %v1594 = vpow.pop %v1593
    %v1595 = vadd.f32 %v1594, 1.0
    %v1596 = vrcp.pop %v1595
    %v1597 = vmul.f32 %v1595, %v1596
    %v1598 = vsub.f32 1.0, %v1597
    %v1599 = vmul.f32 %v1596, %v1598
    %v1600 = vadd.f32 %v1596, %v1599
    %vm1601 = vweird.f32 %v1595
    %vm1602 = vweird.f32 %v1596
    %vm1603 = vmor %vm1601, %vm1602
    %v1604 = vsel %vm1603, %v1596, %v1600
    %v1605 = vand.u32 2147483647, %v1595
    %vm1606 = vcmp.eq.f32.partialorder %v1605, 8.507059e+37
    %v1607 = vand.u32 %v1595, 2147483648
    %v1608 = vor.u32 1.1754944e-38, %v1607
    %v1609 = vsel %vm1606, %v1608, %v1604
    %v1610 = vmul.f32 1.0, %v1609
    %1611 = vmatpush.msra.mxu0 0.0
    %1612 = vmatpush.msra.mxu0 0.0
    %1613 = vmatpush.msra.mxu0 0.0
    %1614 = vmatpush.msra.mxu0 0.0
    %1615 = vmatpush.msra.mxu0 0.0
    %1616 = vmatpush.msra.mxu0 0.0
    %1617 = vmatpush.msra.mxu0 0.0
    %1618 = vmatpush.msra.mxu0 0.0
    %1619 = vmatpush.msra.mxu0 0.0
    %1620 = vmatpush.msra.mxu0 0.0
    %1621 = vmatpush.msra.mxu0 0.0
    %1622 = vmatpush.msra.mxu0 0.0
    %1623 = vmatpush.msra.mxu0 0.0
    %1624 = vmatpush.msra.mxu0 0.0
    %1625 = vmatpush.msra.mxu0 0.0
    %1626 = vmatpush.msra.mxu0 %v53
    %1627 = vmatmul.f32.gmra.mxu0 %v1549
    %v1628 = vpop.f32.mrf.mxu0
    %v1629 = vadd.f32 %v1526, %v1628
    %1630 = vdwg.mxu0
    %v1631 = vadd.f32 %v1629, %v247
    %v1632 = vxor.u32 %v1631, 2147483648
    %v1633 = vmul.f32 %v1632, 1.442695
    %v1634 = vpow.pop %v1633
    %v1635 = vadd.f32 %v1634, 1.0
    %v1636 = vrcp.pop %v1635
    %v1637 = vmul.f32 %v1635, %v1636
    %v1638 = vsub.f32 1.0, %v1637
    %v1639 = vmul.f32 %v1636, %v1638
    %v1640 = vadd.f32 %v1636, %v1639
    %vm1641 = vweird.f32 %v1635
    %vm1642 = vweird.f32 %v1636
    %vm1643 = vmor %vm1641, %vm1642
    %v1644 = vsel %vm1643, %v1636, %v1640
    %v1645 = vand.u32 2147483647, %v1635
    %vm1646 = vcmp.eq.f32.partialorder %v1645, 8.507059e+37
    %v1647 = vand.u32 %v1635, 2147483648
    %v1648 = vor.u32 1.1754944e-38, %v1647
    %v1649 = vsel %vm1646, %v1648, %v1644
    %v1650 = vmul.f32 1.0, %v1649
    %v1651 = vmul.f32 %v1610, %v1546
    %v1652 = vadd.f32 %v1569, %v1651
    %v1653 = vtanh.pop %v1652
    %v1654 = vsub.f32 1.0, %v1650
    %v1655 = vmul.f32 %v1654, %v1653
    %v1656 = vmul.f32 %v1650, %v1460
    %v1657 = vadd.f32 %v1655, %v1656
    %v1659 = vsel %vm89, %v1657, 0
    %1661 = vmatpush.msra.mxu0 0.0
    %1662 = vmatpush.msra.mxu0 0.0
    %1663 = vmatpush.msra.mxu0 0.0
    %1664 = vmatpush.msra.mxu0 0.0
    %1665 = vmatpush.msra.mxu0 0.0
    %1666 = vmatpush.msra.mxu0 0.0
    %1667 = vmatpush.msra.mxu0 0.0
    %1668 = vmatpush.msra.mxu0 0.0
    %1669 = vmatpush.msra.mxu0 0.0
    %1670 = vmatpush.msra.mxu0 0.0
    %1671 = vmatpush.msra.mxu0 0.0
    %1672 = vmatpush.msra.mxu0 0.0
    %1673 = vmatpush.msra.mxu0 %v85
    %1674 = vmatpush.msra.mxu0 %v84
    %1675 = vmatpush.msra.mxu0 %v83
    %1676 = vmatpush.msra.mxu0 %v82
    %1677 = vmatmul.f32.gmra.mxu0 %v1659
    %v1678 = vpop.f32.mrf.mxu0
    %v1679 = vadd.f32 %v277, %v1678
    %1680 = vdwg.mxu0
    %s1681 = scalar_lea.vmem %s7, 14
    %1682 = vst.msk [vmem:[%s1681] sm:$0x3] %vm302, %v1679
    %vm1683 = vcmask 254976
    %1684 = vst.msk [vmem:[#allocation2] sm:$0x3] %vm1683, %v1657
    // Predicated region
    $region38: #{gru_encoder_forward.1} parent=1 // pred_check
      %p1685 = pneg %p45
    $region39: #{gru_encoder_forward.1} parent=1 // pred_check_branch
      %1687 = sbr.rel (%p1685) target = $region41
    $region40: #{gru_encoder_forward.1} parent=1 // pred_region
      %1688 = vst.msk [vmem:[#allocation6] sm:$0x3] %vm1683, %v1657
    $region41: #{gru_encoder_forward.1} parent=1 // pred_fallthru
      _
    // Predicated region
    $region42: #{gru_encoder_forward.1} parent=1 // pred_check
      _
    $region43: #{gru_encoder_forward.1} parent=1 // pred_check_branch
      %1690 = sbr.rel (0) target = $region45
    $region44: #{gru_encoder_forward.1} parent=1 // pred_region
      _
    $region45: #{gru_encoder_forward.1} parent=1 // pred_fallthru
      _
    // Predicated region
    $region46: #{gru_encoder_forward.1} parent=1 // pred_check
      _
    $region47: #{gru_encoder_forward.1} parent=1 // pred_check_branch
      %1692 = sbr.rel (0) target = $region49
    $region48: #{gru_encoder_forward.1} parent=1 // pred_region
      %1694 = vsyncadd [#allocation5], 0
      %s1696 = sshll.u32 [#allocation6], 4
      %s1697 = int_to_ptr.vmem [resolvable:$true] %s1696
      %s1698 = sshll.u32 %s8, 4
      %s1699 = int_to_ptr.hbm [resolvable:$true] %s1698
      %1701 = dma.vmem_to_hbm [thread:$0]  %s1697, 32, %s1699, [#allocation5]
    $region49: #{gru_encoder_forward.1} parent=1 // pred_fallthru
      _
    // Predicated region
    $region50: #{gru_encoder_forward.1} parent=1 // pred_check
      _
    $region51: #{gru_encoder_forward.1} parent=1 // pred_check_branch
      %1703 = sbr.rel (0) target = $region53
    $region52: #{gru_encoder_forward.1} parent=1 // pred_region
      _
    $region53: #{gru_encoder_forward.1} parent=1 // pred_fallthru
      _
    // Predicated region
    $region54: #{gru_encoder_forward.1} parent=1 // pred_check
      _
    $region55: #{gru_encoder_forward.1} parent=1 // pred_check_branch
      %1705 = sbr.rel (0) target = $region57
    $region56: #{gru_encoder_forward.1} parent=1 // pred_region
      %1707 = dma.done [#allocation5], 32
    $region57: #{gru_encoder_forward.1} parent=1 // pred_fallthru
      _
    %1708 = vsyncpa [#allocation4], 1
    %1709 = vsyncpa [#allocation5], 1

</llo_original>
